<compile_context>
chip_gen: v7x
topology: tpu7x:2x2x1
jax: 0.10.0
libtpu: 0.0.40
codegen_flags: <defaults>
</compile_context>

<pallas_src>
import functools
import numpy as np
import jax
import jax.numpy as jnp
from jax.experimental import pallas as pl
from jax.experimental.pallas import tpu as pltpu


def _round_up(x, m):
    return ((x + m - 1) // m) * m


# ----------------------------- Pallas kernel -------------------------------
def _meta_head_kernel(q_ref, attn_ref, pattn_ref,
                      w1_ref, b1_ref, w2_ref, b2_ref, w3_ref, b3_ref,
                      out_ref, *, steps, predicate_num, arity_num):
    A = arity_num
    A2 = A * A
    P = predicate_num
    S = steps

    q = q_ref[...]        # (P*A2, TB) f32, batch on lanes
    attn = attn_ref[...]  # (S*P, TB)   per-step predicate attention
    pattn = pattn_ref[...]  # (S, TB)   path attention
    TB = q.shape[1]

    # final path, kept as A row-blocks of shape (A, TB); block i holds flattened
    # rows i*A .. i*A+A-1 of the (A, A) path matrix for every sample in the tile.
    final_blocks = [jnp.zeros((A, TB), jnp.float32) for _ in range(A)]
    cur_blocks = None
    for s in range(S):
        # matrix_each_step: m[a2, b] = sum_p attn[b, s, p] * query[b, p, a2]
        # -> lane-dense broadcast-FMA over (A2, TB) slabs on the VPU.
        m = jnp.zeros((A2, TB), jnp.float32)
        for p in range(P):
            a_row = attn[s * P + p:s * P + p + 1, :]          # (1, TB)
            m = m + a_row * q[p * A2:(p + 1) * A2, :]         # (A2, TB)

        if s == 0:
            cur_blocks = [m[i * A:(i + 1) * A, :] for i in range(A)]
        else:
            # path_s = matrix_s @ path_{s-1}:
            # new_block_i[j] = sum_k M[i,k] * C[k,j]  (vectorized over batch lanes)
            new_blocks = []
            for i in range(A):
                acc = jnp.zeros((A, TB), jnp.float32)
                for k in range(A):
                    acc = acc + m[i * A + k:i * A + k + 1, :] * cur_blocks[k]
                new_blocks.append(acc)
            cur_blocks = new_blocks

        w = pattn[s:s + 1, :]                                  # (1, TB)
        final_blocks = [fb + w * cb for fb, cb in zip(final_blocks, cur_blocks)]

    final = jnp.concatenate(final_blocks, axis=0)              # (A2, TB) f32

    # MLP head in (features, batch) orientation — lane-dense MXU dots,
    # bf16 operands for the two big layers, f32 accumulation.
    h1 = jnp.maximum(
        jnp.dot(w1_ref[...], final, preferred_element_type=jnp.float32)
        + b1_ref[...], 0.0)                                    # (H1, TB) f32
    h1 = h1.astype(w2_ref.dtype)
    h2 = jnp.maximum(
        jnp.dot(w2_ref[...], h1, preferred_element_type=jnp.float32)
        + b2_ref[...], 0.0)                                    # (H2, TB) f32
    h2 = h2.astype(w3_ref.dtype)
    out_ref[...] = (
        jnp.dot(w3_ref[...], h2, preferred_element_type=jnp.float32)
        + b3_ref[...])                                         # (A_pad, TB) f32


def meta_head_pallas(query, pre_attn, path_attn, mlp_params, *, arity_num, steps,
                     batch_tile=512):
    """query (B,P,A^2), pre_attn (B,S,P), path_attn (B,S) -> score (B,A)."""
    B, P, A2 = query.shape
    A = arity_num
    S = steps
    assert A * A == A2
    assert pre_attn.shape == (B, S, P) and path_attn.shape == (B, S)
    assert batch_tile % 128 == 0

    w1, b1, w2, b2, w3, b3 = mlp_params
    H1, H2 = w1.shape[1], w2.shape[1]
    Ao = _round_up(A, 8)   # sublane-aligned (and lane-dense, batch-on-lanes) output

    # Transposed ("features x batch") weight layout. W1 stays f32 (32 KB, K=16);
    # W2/W3 in bf16 for the bf16-native MXU on v6e/v7x (f32 accumulate in-kernel).
    w1t = w1.T.astype(jnp.float32)                              # (H1, A2)
    w2t = w2.T.astype(jnp.bfloat16)                             # (H2, H1)
    w3t = jnp.pad(w3.T.astype(jnp.bfloat16), ((0, Ao - A), (0, 0)))  # (Ao, H2)
    b1c = b1.reshape(H1, 1).astype(jnp.float32)
    b2c = b2.reshape(H2, 1).astype(jnp.float32)
    b3c = jnp.pad(b3.reshape(A, 1).astype(jnp.float32), ((0, Ao - A), (0, 0)))

    # Batch tile on the lane axis: multiple of 128, default 512 (multiple of 256
    # for v6e/v7x MXU).  If the whole batch fits in one tile, halve it (when it
    # stays 128-aligned) so grid >= 2 and the v7x megacore can split the batch.
    TB = min(batch_tile, _round_up(B, 128))
    Bp = _round_up(B, TB)
    if Bp // TB < 2 and TB % 256 == 0:
        TB //= 2
        Bp = _round_up(B, TB)

    def to_lanes(x, feat):
        xt = x.reshape(B, feat).astype(jnp.float32).T           # (feat, B)
        if Bp != B:
            xt = jnp.pad(xt, ((0, 0), (0, Bp - B)))
        return xt

    q_t = to_lanes(query, P * A2)        # (P*A2, Bp)
    attn_t = to_lanes(pre_attn, S * P)   # (S*P, Bp)
    pattn_t = to_lanes(path_attn, S)     # (S, Bp)

    kernel = functools.partial(_meta_head_kernel, steps=S, predicate_num=P,
                               arity_num=A)
    wmap = lambda i: (0, 0)
    score_t = pl.pallas_call(
        kernel,
        out_shape=jax.ShapeDtypeStruct((Ao, Bp), jnp.float32),
        grid=(Bp // TB,),
        in_specs=[
            pl.BlockSpec((P * A2, TB), lambda i: (0, i)),   # query (transposed)
            pl.BlockSpec((S * P, TB), lambda i: (0, i)),    # predicate attention
            pl.BlockSpec((S, TB), lambda i: (0, i)),        # path attention
            pl.BlockSpec((H1, A2), wmap),                   # W1^T  (f32)
            pl.BlockSpec((H1, 1), wmap),                    # b1
            pl.BlockSpec((H2, H1), wmap),                   # W2^T  (bf16)
            pl.BlockSpec((H2, 1), wmap),                    # b2
            pl.BlockSpec((Ao, H2), wmap),                   # W3^T  (bf16, padded)
            pl.BlockSpec((Ao, 1), wmap),                    # b3    (padded)
        ],
        out_specs=pl.BlockSpec((Ao, TB), lambda i: (0, i)),
        compiler_params=pltpu.CompilerParams(dimension_semantics=("parallel",)),
    )(q_t, attn_t, pattn_t, w1t, b1c, w2t, b2c, w3t, b3c)
    return score_t[:A, :B].T                                   # (B, A)


# ------------------- synthesized Transformer (plain JAX glue) ---------------
def _softmax(x, axis=-1):
    x = x - jnp.max(x, axis=axis, keepdims=True)
    e = jnp.exp(x)
    return e / jnp.sum(e, axis=axis, keepdims=True)


def _init_linear(key, fan_in, fan_out):
    w = jax.random.normal(key, (fan_in, fan_out), jnp.float32) / jnp.sqrt(fan_in)
    return w, jnp.zeros((fan_out,), jnp.float32)


def _init_encoder_layer(key, d_model, d_inner):
    ks = jax.random.split(key, 6)
    s = 1.0 / jnp.sqrt(d_model)
    return dict(
        wq=jax.random.normal(ks[0], (d_model, d_model), jnp.float32) * s,
        wk=jax.random.normal(ks[1], (d_model, d_model), jnp.float32) * s,
        wv=jax.random.normal(ks[2], (d_model, d_model), jnp.float32) * s,
        wo=jax.random.normal(ks[3], (d_model, d_model), jnp.float32) * s,
        w1=jax.random.normal(ks[4], (d_model, d_inner), jnp.float32) * s,
        b1=jnp.zeros((d_inner,), jnp.float32),
        w2=jax.random.normal(ks[5], (d_inner, d_model), jnp.float32) / jnp.sqrt(d_inner),
        b2=jnp.zeros((d_model,), jnp.float32),
    )


def _encoder_layer(x, p, n_head):
    B, T, D = x.shape
    hd = D // n_head
    q = (x @ p['wq']).reshape(B, T, n_head, hd).transpose(0, 2, 1, 3)
    k = (x @ p['wk']).reshape(B, T, n_head, hd).transpose(0, 2, 1, 3)
    v = (x @ p['wv']).reshape(B, T, n_head, hd).transpose(0, 2, 1, 3)
    a = _softmax(jnp.einsum('bhqd,bhkd->bhqk', q, k) / jnp.sqrt(hd), -1)
    o = jnp.einsum('bhqk,bhkd->bhqd', a, v).transpose(0, 2, 1, 3).reshape(B, T, D)
    x = x + o @ p['wo']
    h = jax.nn.relu(x @ p['w1'] + p['b1'])
    return x + h @ p['w2'] + p['b2']


def init_transformer(key, steps, d_input, inner, out_emb, n_layers, n_head):
    keys = jax.random.split(key, n_layers + 2)
    layers = [_init_encoder_layer(keys[i], d_input, inner) for i in range(n_layers)]
    step_q = jax.random.normal(keys[-2], (steps, d_input), jnp.float32) / jnp.sqrt(d_input)
    w_emb, b_emb = _init_linear(keys[-1], d_input, out_emb)
    return dict(layers=layers, step_q=step_q, w_emb=w_emb, b_emb=b_emb, n_head=n_head)


def run_transformer(params, x):
    """x (B, T, d_input) -> (scores (B,S,T), attn (B,S,T), embeddings (B,S,out_emb))."""
    for lp in params['layers']:
        x = _encoder_layer(x, lp, params['n_head'])
    D = x.shape[-1]
    scores = jnp.einsum('btd,sd->bst', x, params['step_q']) / jnp.sqrt(D)
    attn = _softmax(scores, axis=-1)
    ctx = jnp.einsum('bst,btd->bsd', attn, x)
    emb = ctx @ params['w_emb'] + params['b_emb']
    return scores, attn, emb


# ------------------------------ MetaModel -----------------------------------
def init_metamodel(key, predicate_num, arity_num, steps, output_embedding_size,
                   n_layers, n_head):
    A2 = arity_num ** 2
    ks = jax.random.split(key, 6)
    return dict(
        predicate_transformer=init_transformer(
            ks[0], steps, A2, predicate_num * A2, output_embedding_size,
            n_layers, n_head),
        path_transformer=init_transformer(
            ks[1], 1, output_embedding_size, predicate_num * A2, 128,
            n_layers, n_head),
        transition=jax.random.normal(ks[2], (arity_num, arity_num), jnp.float32),  # unused in forward (parity)
        linear=_init_linear(ks[3], A2, 512),
        linear1=_init_linear(ks[4], 512, 256),
        linear2=_init_linear(ks[5], 256, arity_num),
    )


def metamodel_forward(params, query, *, predicate_num, arity_num, steps):
    # predicate transformer: per-step attention over predicate tokens + embeddings
    _, pre_attn, pre_emb = run_transformer(params['predicate_transformer'], query)  # (B,S,P),(B,S,E)
    # path transformer over concatenated per-step embeddings; last step's attention
    _, path_attn_bst, _ = run_transformer(params['path_transformer'], pre_emb)      # (B,1,S)
    path_attn = path_attn_bst[:, -1, :]                                              # (B,S)

    w1, b1 = params['linear']
    w2, b2 = params['linear1']
    w3, b3 = params['linear2']
    score = meta_head_pallas(query, pre_attn, path_attn,
                             (w1, b1, w2, b2, w3, b3),
                             arity_num=arity_num, steps=steps)
    pre_attn_list = [pre_attn[:, s, :, None] for s in range(steps)]  # (B,P,1) each
    return score, path_attn[:, :, None], pre_attn_list


def metamodel_head_ref(query, pre_attn, path_attn, mlp_params, *, arity_num):
    """Pure-JAX f32 reference for the Pallas hot path."""
    B, P, A2 = query.shape
    A = arity_num
    S = pre_attn.shape[1]
    q4 = query.reshape(B, P, A, A)
    mats = jnp.einsum('bsp,bpij->bsij', pre_attn, q4)
    paths = [mats[:, 0]]
    for s in range(1, S):
        paths.append(jnp.einsum('bij,bjk->bik', mats[:, s], paths[-1]))
    path = jnp.stack(paths, 1).reshape(B, S, A2)
    final = jnp.einsum('bs,bsa->ba', path_attn, path)
    w1, b1, w2, b2, w3, b3 = mlp_params
    h = jax.nn.relu(final @ w1 + b1)
    h = jax.nn.relu(h @ w2 + b2)
    return h @ w3 + b3


if __name__ == "__main__":
    predicate_num, arity_num, steps = 6, 4, 3
    output_embedding_size, n_layers, n_head = 32, 1, 2
    batch = 2

    key = jax.random.PRNGKey(0)
    kq, kp, kq2 = jax.random.split(key, 3)
    query = jax.random.normal(kq, (batch, predicate_num, arity_num ** 2), jnp.float32)
    params = init_metamodel(kp, predicate_num, arity_num, steps,
                            output_embedding_size, n_layers, n_head)

    score, path_attn, pre_attn_list = metamodel_forward(
        params, query, predicate_num=predicate_num, arity_num=arity_num, steps=steps)
    score = jax.block_until_ready(score)

    w1, b1 = params['linear']
    w2, b2 = params['linear1']
    w3, b3 = params['linear2']
    mlp = (w1, b1, w2, b2, w3, b3)

    def check(q):
        # correctness check of the Pallas head against a pure-JAX f32 reference
        # (tolerance covers the bf16 W2/W3 operands; accumulation stays f32)
        _, pre_attn_r, pre_emb_r = run_transformer(params['predicate_transformer'], q)
        _, path_bst_r, _ = run_transformer(params['path_transformer'], pre_emb_r)
        path_attn_r = path_bst_r[:, -1, :]
        got = meta_head_pallas(q, pre_attn_r, path_attn_r, mlp,
                               arity_num=arity_num, steps=steps)
        want = metamodel_head_ref(q, pre_attn_r, path_attn_r, mlp,
                                  arity_num=arity_num)
        np.testing.assert_allclose(np.asarray(got), np.asarray(want),
                                   rtol=2e-2, atol=2e-2)

    check(query)                                                      # B=2, 1 tile
    big_query = jax.random.normal(kq2, (600, predicate_num, arity_num ** 2),
                                  jnp.float32)
    check(big_query)                                                  # B=600, 2-tile grid + padding

    assert score.shape == (batch, arity_num)
    assert path_attn.shape == (batch, steps, 1)
    assert len(pre_attn_list) == steps and pre_attn_list[0].shape == (batch, predicate_num, 1)
    print("KERNEL_OK")
</pallas_src>

<mosaic_0001>
module attributes {stable_mosaic.version = 11 : i64} {
  func.func @_meta_head_kernel(%arg0: i32, %arg1: memref<96x128xf32, #tpu.memory_space<vmem>>, %arg2: memref<18x128xf32, #tpu.memory_space<vmem>>, %arg3: memref<3x128xf32, #tpu.memory_space<vmem>>, %arg4: memref<512x16xf32, #tpu.memory_space<vmem>>, %arg5: memref<512x1xf32, #tpu.memory_space<vmem>>, %arg6: memref<256x512xbf16, #tpu.memory_space<vmem>>, %arg7: memref<256x1xf32, #tpu.memory_space<vmem>>, %arg8: memref<8x256xbf16, #tpu.memory_space<vmem>>, %arg9: memref<8x1xf32, #tpu.memory_space<vmem>>, %arg10: memref<8x128xf32, #tpu.memory_space<vmem>>) attributes {dimension_semantics = [#tpu.dimension_semantics<parallel>], iteration_bounds = array<i64: 1>, scalar_prefetch = 0 : i64, scratch_operands = 0 : i64, tpu.core_type = #tpu.core_type<tc>, window_params = [{transform_indices = @transform_0, window_bounds = array<i64: 96, 128>}, {transform_indices = @transform_1, window_bounds = array<i64: 18, 128>}, {transform_indices = @transform_2, window_bounds = array<i64: 3, 128>}, {pipeline_mode = #tpu.pipeline_mode<synchronous>, transform_indices = @transform_3, window_bounds = array<i64: 512, 16>}, {pipeline_mode = #tpu.pipeline_mode<synchronous>, transform_indices = @transform_4, window_bounds = array<i64: 512, 1>}, {pipeline_mode = #tpu.pipeline_mode<synchronous>, transform_indices = @transform_5, window_bounds = array<i64: 256, 512>}, {pipeline_mode = #tpu.pipeline_mode<synchronous>, transform_indices = @transform_6, window_bounds = array<i64: 256, 1>}, {pipeline_mode = #tpu.pipeline_mode<synchronous>, transform_indices = @transform_7, window_bounds = array<i64: 8, 256>}, {pipeline_mode = #tpu.pipeline_mode<synchronous>, transform_indices = @transform_8, window_bounds = array<i64: 8, 1>}, {transform_indices = @transform_9, window_bounds = array<i64: 8, 128>}]} {
    %c0 = arith.constant 0 : index
    %c0_0 = arith.constant 0 : index
    %0 = vector.load %arg1[%c0, %c0_0] : memref<96x128xf32, #tpu.memory_space<vmem>>, vector<96x128xf32>
    %c0_1 = arith.constant 0 : index
    %c0_2 = arith.constant 0 : index
    %1 = vector.load %arg2[%c0_1, %c0_2] : memref<18x128xf32, #tpu.memory_space<vmem>>, vector<18x128xf32>
    %c0_3 = arith.constant 0 : index
    %c0_4 = arith.constant 0 : index
    %2 = vector.load %arg3[%c0_3, %c0_4] : memref<3x128xf32, #tpu.memory_space<vmem>>, vector<3x128xf32>
    %cst = arith.constant 0.000000e+00 : f32
    %3 = vector.broadcast %cst : f32 to vector<4x128xf32>
    %cst_5 = arith.constant 0.000000e+00 : f32
    %4 = vector.broadcast %cst_5 : f32 to vector<4x128xf32>
    %cst_6 = arith.constant 0.000000e+00 : f32
    %5 = vector.broadcast %cst_6 : f32 to vector<4x128xf32>
    %cst_7 = arith.constant 0.000000e+00 : f32
    %6 = vector.broadcast %cst_7 : f32 to vector<4x128xf32>
    %cst_8 = arith.constant 0.000000e+00 : f32
    %7 = vector.broadcast %cst_8 : f32 to vector<16x128xf32>
    %8 = vector.extract_strided_slice %1 {offsets = [0, 0], sizes = [1, 128], strides = [1, 1]} : vector<18x128xf32> to vector<1x128xf32>
    %9 = vector.extract_strided_slice %0 {offsets = [0, 0], sizes = [16, 128], strides = [1, 1]} : vector<96x128xf32> to vector<16x128xf32>
    %10 = vector.broadcast %8 : vector<1x128xf32> to vector<16x128xf32>
    %11 = arith.mulf %10, %9 : vector<16x128xf32>
    %12 = arith.addf %7, %11 : vector<16x128xf32>
    %13 = vector.extract_strided_slice %1 {offsets = [1, 0], sizes = [1, 128], strides = [1, 1]} : vector<18x128xf32> to vector<1x128xf32>
    %14 = vector.extract_strided_slice %0 {offsets = [16, 0], sizes = [16, 128], strides = [1, 1]} : vector<96x128xf32> to vector<16x128xf32>
    %15 = vector.broadcast %13 : vector<1x128xf32> to vector<16x128xf32>
    %16 = arith.mulf %15, %14 : vector<16x128xf32>
    %17 = arith.addf %12, %16 : vector<16x128xf32>
    %18 = vector.extract_strided_slice %1 {offsets = [2, 0], sizes = [1, 128], strides = [1, 1]} : vector<18x128xf32> to vector<1x128xf32>
    %19 = vector.extract_strided_slice %0 {offsets = [32, 0], sizes = [16, 128], strides = [1, 1]} : vector<96x128xf32> to vector<16x128xf32>
    %20 = vector.broadcast %18 : vector<1x128xf32> to vector<16x128xf32>
    %21 = arith.mulf %20, %19 : vector<16x128xf32>
    %22 = arith.addf %17, %21 : vector<16x128xf32>
    %23 = vector.extract_strided_slice %1 {offsets = [3, 0], sizes = [1, 128], strides = [1, 1]} : vector<18x128xf32> to vector<1x128xf32>
    %24 = vector.extract_strided_slice %0 {offsets = [48, 0], sizes = [16, 128], strides = [1, 1]} : vector<96x128xf32> to vector<16x128xf32>
    %25 = vector.broadcast %23 : vector<1x128xf32> to vector<16x128xf32>
    %26 = arith.mulf %25, %24 : vector<16x128xf32>
    %27 = arith.addf %22, %26 : vector<16x128xf32>
    %28 = vector.extract_strided_slice %1 {offsets = [4, 0], sizes = [1, 128], strides = [1, 1]} : vector<18x128xf32> to vector<1x128xf32>
    %29 = vector.extract_strided_slice %0 {offsets = [64, 0], sizes = [16, 128], strides = [1, 1]} : vector<96x128xf32> to vector<16x128xf32>
    %30 = vector.broadcast %28 : vector<1x128xf32> to vector<16x128xf32>
    %31 = arith.mulf %30, %29 : vector<16x128xf32>
    %32 = arith.addf %27, %31 : vector<16x128xf32>
    %33 = vector.extract_strided_slice %1 {offsets = [5, 0], sizes = [1, 128], strides = [1, 1]} : vector<18x128xf32> to vector<1x128xf32>
    %34 = vector.extract_strided_slice %0 {offsets = [80, 0], sizes = [16, 128], strides = [1, 1]} : vector<96x128xf32> to vector<16x128xf32>
    %35 = vector.broadcast %33 : vector<1x128xf32> to vector<16x128xf32>
    %36 = arith.mulf %35, %34 : vector<16x128xf32>
    %37 = arith.addf %32, %36 : vector<16x128xf32>
    %38 = vector.extract_strided_slice %37 {offsets = [0, 0], sizes = [4, 128], strides = [1, 1]} : vector<16x128xf32> to vector<4x128xf32>
    %39 = vector.extract_strided_slice %37 {offsets = [4, 0], sizes = [4, 128], strides = [1, 1]} : vector<16x128xf32> to vector<4x128xf32>
    %40 = vector.extract_strided_slice %37 {offsets = [8, 0], sizes = [4, 128], strides = [1, 1]} : vector<16x128xf32> to vector<4x128xf32>
    %41 = vector.extract_strided_slice %37 {offsets = [12, 0], sizes = [4, 128], strides = [1, 1]} : vector<16x128xf32> to vector<4x128xf32>
    %42 = vector.extract_strided_slice %2 {offsets = [0, 0], sizes = [1, 128], strides = [1, 1]} : vector<3x128xf32> to vector<1x128xf32>
    %43 = vector.broadcast %42 : vector<1x128xf32> to vector<4x128xf32>
    %44 = arith.mulf %43, %38 : vector<4x128xf32>
    %45 = arith.addf %3, %44 : vector<4x128xf32>
    %46 = vector.broadcast %42 : vector<1x128xf32> to vector<4x128xf32>
    %47 = arith.mulf %46, %39 : vector<4x128xf32>
    %48 = arith.addf %4, %47 : vector<4x128xf32>
    %49 = vector.broadcast %42 : vector<1x128xf32> to vector<4x128xf32>
    %50 = arith.mulf %49, %40 : vector<4x128xf32>
    %51 = arith.addf %5, %50 : vector<4x128xf32>
    %52 = vector.broadcast %42 : vector<1x128xf32> to vector<4x128xf32>
    %53 = arith.mulf %52, %41 : vector<4x128xf32>
    %54 = arith.addf %6, %53 : vector<4x128xf32>
    %cst_9 = arith.constant 0.000000e+00 : f32
    %55 = vector.broadcast %cst_9 : f32 to vector<16x128xf32>
    %56 = vector.extract_strided_slice %1 {offsets = [6, 0], sizes = [1, 128], strides = [1, 1]} : vector<18x128xf32> to vector<1x128xf32>
    %57 = vector.extract_strided_slice %0 {offsets = [0, 0], sizes = [16, 128], strides = [1, 1]} : vector<96x128xf32> to vector<16x128xf32>
    %58 = vector.broadcast %56 : vector<1x128xf32> to vector<16x128xf32>
    %59 = arith.mulf %58, %57 : vector<16x128xf32>
    %60 = arith.addf %55, %59 : vector<16x128xf32>
    %61 = vector.extract_strided_slice %1 {offsets = [7, 0], sizes = [1, 128], strides = [1, 1]} : vector<18x128xf32> to vector<1x128xf32>
    %62 = vector.extract_strided_slice %0 {offsets = [16, 0], sizes = [16, 128], strides = [1, 1]} : vector<96x128xf32> to vector<16x128xf32>
    %63 = vector.broadcast %61 : vector<1x128xf32> to vector<16x128xf32>
    %64 = arith.mulf %63, %62 : vector<16x128xf32>
    %65 = arith.addf %60, %64 : vector<16x128xf32>
    %66 = vector.extract_strided_slice %1 {offsets = [8, 0], sizes = [1, 128], strides = [1, 1]} : vector<18x128xf32> to vector<1x128xf32>
    %67 = vector.extract_strided_slice %0 {offsets = [32, 0], sizes = [16, 128], strides = [1, 1]} : vector<96x128xf32> to vector<16x128xf32>
    %68 = vector.broadcast %66 : vector<1x128xf32> to vector<16x128xf32>
    %69 = arith.mulf %68, %67 : vector<16x128xf32>
    %70 = arith.addf %65, %69 : vector<16x128xf32>
    %71 = vector.extract_strided_slice %1 {offsets = [9, 0], sizes = [1, 128], strides = [1, 1]} : vector<18x128xf32> to vector<1x128xf32>
    %72 = vector.extract_strided_slice %0 {offsets = [48, 0], sizes = [16, 128], strides = [1, 1]} : vector<96x128xf32> to vector<16x128xf32>
    %73 = vector.broadcast %71 : vector<1x128xf32> to vector<16x128xf32>
    %74 = arith.mulf %73, %72 : vector<16x128xf32>
    %75 = arith.addf %70, %74 : vector<16x128xf32>
    %76 = vector.extract_strided_slice %1 {offsets = [10, 0], sizes = [1, 128], strides = [1, 1]} : vector<18x128xf32> to vector<1x128xf32>
    %77 = vector.extract_strided_slice %0 {offsets = [64, 0], sizes = [16, 128], strides = [1, 1]} : vector<96x128xf32> to vector<16x128xf32>
    %78 = vector.broadcast %76 : vector<1x128xf32> to vector<16x128xf32>
    %79 = arith.mulf %78, %77 : vector<16x128xf32>
    %80 = arith.addf %75, %79 : vector<16x128xf32>
    %81 = vector.extract_strided_slice %1 {offsets = [11, 0], sizes = [1, 128], strides = [1, 1]} : vector<18x128xf32> to vector<1x128xf32>
    %82 = vector.extract_strided_slice %0 {offsets = [80, 0], sizes = [16, 128], strides = [1, 1]} : vector<96x128xf32> to vector<16x128xf32>
    %83 = vector.broadcast %81 : vector<1x128xf32> to vector<16x128xf32>
    %84 = arith.mulf %83, %82 : vector<16x128xf32>
    %85 = arith.addf %80, %84 : vector<16x128xf32>
    %cst_10 = arith.constant 0.000000e+00 : f32
    %86 = vector.broadcast %cst_10 : f32 to vector<4x128xf32>
    %87 = vector.extract_strided_slice %85 {offsets = [0, 0], sizes = [1, 128], strides = [1, 1]} : vector<16x128xf32> to vector<1x128xf32>
    %88 = vector.broadcast %87 : vector<1x128xf32> to vector<4x128xf32>
    %89 = arith.mulf %88, %38 : vector<4x128xf32>
    %90 = arith.addf %86, %89 : vector<4x128xf32>
    %91 = vector.extract_strided_slice %85 {offsets = [1, 0], sizes = [1, 128], strides = [1, 1]} : vector<16x128xf32> to vector<1x128xf32>
    %92 = vector.broadcast %91 : vector<1x128xf32> to vector<4x128xf32>
    %93 = arith.mulf %92, %39 : vector<4x128xf32>
    %94 = arith.addf %90, %93 : vector<4x128xf32>
    %95 = vector.extract_strided_slice %85 {offsets = [2, 0], sizes = [1, 128], strides = [1, 1]} : vector<16x128xf32> to vector<1x128xf32>
    %96 = vector.broadcast %95 : vector<1x128xf32> to vector<4x128xf32>
    %97 = arith.mulf %96, %40 : vector<4x128xf32>
    %98 = arith.addf %94, %97 : vector<4x128xf32>
    %99 = vector.extract_strided_slice %85 {offsets = [3, 0], sizes = [1, 128], strides = [1, 1]} : vector<16x128xf32> to vector<1x128xf32>
    %100 = vector.broadcast %99 : vector<1x128xf32> to vector<4x128xf32>
    %101 = arith.mulf %100, %41 : vector<4x128xf32>
    %102 = arith.addf %98, %101 : vector<4x128xf32>
    %cst_11 = arith.constant 0.000000e+00 : f32
    %103 = vector.broadcast %cst_11 : f32 to vector<4x128xf32>
    %104 = vector.extract_strided_slice %85 {offsets = [4, 0], sizes = [1, 128], strides = [1, 1]} : vector<16x128xf32> to vector<1x128xf32>
    %105 = vector.broadcast %104 : vector<1x128xf32> to vector<4x128xf32>
    %106 = arith.mulf %105, %38 : vector<4x128xf32>
    %107 = arith.addf %103, %106 : vector<4x128xf32>
    %108 = vector.extract_strided_slice %85 {offsets = [5, 0], sizes = [1, 128], strides = [1, 1]} : vector<16x128xf32> to vector<1x128xf32>
    %109 = vector.broadcast %108 : vector<1x128xf32> to vector<4x128xf32>
    %110 = arith.mulf %109, %39 : vector<4x128xf32>
    %111 = arith.addf %107, %110 : vector<4x128xf32>
    %112 = vector.extract_strided_slice %85 {offsets = [6, 0], sizes = [1, 128], strides = [1, 1]} : vector<16x128xf32> to vector<1x128xf32>
    %113 = vector.broadcast %112 : vector<1x128xf32> to vector<4x128xf32>
    %114 = arith.mulf %113, %40 : vector<4x128xf32>
    %115 = arith.addf %111, %114 : vector<4x128xf32>
    %116 = vector.extract_strided_slice %85 {offsets = [7, 0], sizes = [1, 128], strides = [1, 1]} : vector<16x128xf32> to vector<1x128xf32>
    %117 = vector.broadcast %116 : vector<1x128xf32> to vector<4x128xf32>
    %118 = arith.mulf %117, %41 : vector<4x128xf32>
    %119 = arith.addf %115, %118 : vector<4x128xf32>
    %cst_12 = arith.constant 0.000000e+00 : f32
    %120 = vector.broadcast %cst_12 : f32 to vector<4x128xf32>
    %121 = vector.extract_strided_slice %85 {offsets = [8, 0], sizes = [1, 128], strides = [1, 1]} : vector<16x128xf32> to vector<1x128xf32>
    %122 = vector.broadcast %121 : vector<1x128xf32> to vector<4x128xf32>
    %123 = arith.mulf %122, %38 : vector<4x128xf32>
    %124 = arith.addf %120, %123 : vector<4x128xf32>
    %125 = vector.extract_strided_slice %85 {offsets = [9, 0], sizes = [1, 128], strides = [1, 1]} : vector<16x128xf32> to vector<1x128xf32>
    %126 = vector.broadcast %125 : vector<1x128xf32> to vector<4x128xf32>
    %127 = arith.mulf %126, %39 : vector<4x128xf32>
    %128 = arith.addf %124, %127 : vector<4x128xf32>
    %129 = vector.extract_strided_slice %85 {offsets = [10, 0], sizes = [1, 128], strides = [1, 1]} : vector<16x128xf32> to vector<1x128xf32>
    %130 = vector.broadcast %129 : vector<1x128xf32> to vector<4x128xf32>
    %131 = arith.mulf %130, %40 : vector<4x128xf32>
    %132 = arith.addf %128, %131 : vector<4x128xf32>
    %133 = vector.extract_strided_slice %85 {offsets = [11, 0], sizes = [1, 128], strides = [1, 1]} : vector<16x128xf32> to vector<1x128xf32>
    %134 = vector.broadcast %133 : vector<1x128xf32> to vector<4x128xf32>
    %135 = arith.mulf %134, %41 : vector<4x128xf32>
    %136 = arith.addf %132, %135 : vector<4x128xf32>
    %cst_13 = arith.constant 0.000000e+00 : f32
    %137 = vector.broadcast %cst_13 : f32 to vector<4x128xf32>
    %138 = vector.extract_strided_slice %85 {offsets = [12, 0], sizes = [1, 128], strides = [1, 1]} : vector<16x128xf32> to vector<1x128xf32>
    %139 = vector.broadcast %138 : vector<1x128xf32> to vector<4x128xf32>
    %140 = arith.mulf %139, %38 : vector<4x128xf32>
    %141 = arith.addf %137, %140 : vector<4x128xf32>
    %142 = vector.extract_strided_slice %85 {offsets = [13, 0], sizes = [1, 128], strides = [1, 1]} : vector<16x128xf32> to vector<1x128xf32>
    %143 = vector.broadcast %142 : vector<1x128xf32> to vector<4x128xf32>
    %144 = arith.mulf %143, %39 : vector<4x128xf32>
    %145 = arith.addf %141, %144 : vector<4x128xf32>
    %146 = vector.extract_strided_slice %85 {offsets = [14, 0], sizes = [1, 128], strides = [1, 1]} : vector<16x128xf32> to vector<1x128xf32>
    %147 = vector.broadcast %146 : vector<1x128xf32> to vector<4x128xf32>
    %148 = arith.mulf %147, %40 : vector<4x128xf32>
    %149 = arith.addf %145, %148 : vector<4x128xf32>
    %150 = vector.extract_strided_slice %85 {offsets = [15, 0], sizes = [1, 128], strides = [1, 1]} : vector<16x128xf32> to vector<1x128xf32>
    %151 = vector.broadcast %150 : vector<1x128xf32> to vector<4x128xf32>
    %152 = arith.mulf %151, %41 : vector<4x128xf32>
    %153 = arith.addf %149, %152 : vector<4x128xf32>
    %154 = vector.extract_strided_slice %2 {offsets = [1, 0], sizes = [1, 128], strides = [1, 1]} : vector<3x128xf32> to vector<1x128xf32>
    %155 = vector.broadcast %154 : vector<1x128xf32> to vector<4x128xf32>
    %156 = arith.mulf %155, %102 : vector<4x128xf32>
    %157 = arith.addf %45, %156 : vector<4x128xf32>
    %158 = vector.broadcast %154 : vector<1x128xf32> to vector<4x128xf32>
    %159 = arith.mulf %158, %119 : vector<4x128xf32>
    %160 = arith.addf %48, %159 : vector<4x128xf32>
    %161 = vector.broadcast %154 : vector<1x128xf32> to vector<4x128xf32>
    %162 = arith.mulf %161, %136 : vector<4x128xf32>
    %163 = arith.addf %51, %162 : vector<4x128xf32>
    %164 = vector.broadcast %154 : vector<1x128xf32> to vector<4x128xf32>
    %165 = arith.mulf %164, %153 : vector<4x128xf32>
    %166 = arith.addf %54, %165 : vector<4x128xf32>
    %cst_14 = arith.constant 0.000000e+00 : f32
    %167 = vector.broadcast %cst_14 : f32 to vector<16x128xf32>
    %168 = vector.extract_strided_slice %1 {offsets = [12, 0], sizes = [1, 128], strides = [1, 1]} : vector<18x128xf32> to vector<1x128xf32>
    %169 = vector.extract_strided_slice %0 {offsets = [0, 0], sizes = [16, 128], strides = [1, 1]} : vector<96x128xf32> to vector<16x128xf32>
    %170 = vector.broadcast %168 : vector<1x128xf32> to vector<16x128xf32>
    %171 = arith.mulf %170, %169 : vector<16x128xf32>
    %172 = arith.addf %167, %171 : vector<16x128xf32>
    %173 = vector.extract_strided_slice %1 {offsets = [13, 0], sizes = [1, 128], strides = [1, 1]} : vector<18x128xf32> to vector<1x128xf32>
    %174 = vector.extract_strided_slice %0 {offsets = [16, 0], sizes = [16, 128], strides = [1, 1]} : vector<96x128xf32> to vector<16x128xf32>
    %175 = vector.broadcast %173 : vector<1x128xf32> to vector<16x128xf32>
    %176 = arith.mulf %175, %174 : vector<16x128xf32>
    %177 = arith.addf %172, %176 : vector<16x128xf32>
    %178 = vector.extract_strided_slice %1 {offsets = [14, 0], sizes = [1, 128], strides = [1, 1]} : vector<18x128xf32> to vector<1x128xf32>
    %179 = vector.extract_strided_slice %0 {offsets = [32, 0], sizes = [16, 128], strides = [1, 1]} : vector<96x128xf32> to vector<16x128xf32>
    %180 = vector.broadcast %178 : vector<1x128xf32> to vector<16x128xf32>
    %181 = arith.mulf %180, %179 : vector<16x128xf32>
    %182 = arith.addf %177, %181 : vector<16x128xf32>
    %183 = vector.extract_strided_slice %1 {offsets = [15, 0], sizes = [1, 128], strides = [1, 1]} : vector<18x128xf32> to vector<1x128xf32>
    %184 = vector.extract_strided_slice %0 {offsets = [48, 0], sizes = [16, 128], strides = [1, 1]} : vector<96x128xf32> to vector<16x128xf32>
    %185 = vector.broadcast %183 : vector<1x128xf32> to vector<16x128xf32>
    %186 = arith.mulf %185, %184 : vector<16x128xf32>
    %187 = arith.addf %182, %186 : vector<16x128xf32>
    %188 = vector.extract_strided_slice %1 {offsets = [16, 0], sizes = [1, 128], strides = [1, 1]} : vector<18x128xf32> to vector<1x128xf32>
    %189 = vector.extract_strided_slice %0 {offsets = [64, 0], sizes = [16, 128], strides = [1, 1]} : vector<96x128xf32> to vector<16x128xf32>
    %190 = vector.broadcast %188 : vector<1x128xf32> to vector<16x128xf32>
    %191 = arith.mulf %190, %189 : vector<16x128xf32>
    %192 = arith.addf %187, %191 : vector<16x128xf32>
    %193 = vector.extract_strided_slice %1 {offsets = [17, 0], sizes = [1, 128], strides = [1, 1]} : vector<18x128xf32> to vector<1x128xf32>
    %194 = vector.extract_strided_slice %0 {offsets = [80, 0], sizes = [16, 128], strides = [1, 1]} : vector<96x128xf32> to vector<16x128xf32>
    %195 = vector.broadcast %193 : vector<1x128xf32> to vector<16x128xf32>
    %196 = arith.mulf %195, %194 : vector<16x128xf32>
    %197 = arith.addf %192, %196 : vector<16x128xf32>
    %cst_15 = arith.constant 0.000000e+00 : f32
    %198 = vector.broadcast %cst_15 : f32 to vector<4x128xf32>
    %199 = vector.extract_strided_slice %197 {offsets = [0, 0], sizes = [1, 128], strides = [1, 1]} : vector<16x128xf32> to vector<1x128xf32>
    %200 = vector.broadcast %199 : vector<1x128xf32> to vector<4x128xf32>
    %201 = arith.mulf %200, %102 : vector<4x128xf32>
    %202 = arith.addf %198, %201 : vector<4x128xf32>
    %203 = vector.extract_strided_slice %197 {offsets = [1, 0], sizes = [1, 128], strides = [1, 1]} : vector<16x128xf32> to vector<1x128xf32>
    %204 = vector.broadcast %203 : vector<1x128xf32> to vector<4x128xf32>
    %205 = arith.mulf %204, %119 : vector<4x128xf32>
    %206 = arith.addf %202, %205 : vector<4x128xf32>
    %207 = vector.extract_strided_slice %197 {offsets = [2, 0], sizes = [1, 128], strides = [1, 1]} : vector<16x128xf32> to vector<1x128xf32>
    %208 = vector.broadcast %207 : vector<1x128xf32> to vector<4x128xf32>
    %209 = arith.mulf %208, %136 : vector<4x128xf32>
    %210 = arith.addf %206, %209 : vector<4x128xf32>
    %211 = vector.extract_strided_slice %197 {offsets = [3, 0], sizes = [1, 128], strides = [1, 1]} : vector<16x128xf32> to vector<1x128xf32>
    %212 = vector.broadcast %211 : vector<1x128xf32> to vector<4x128xf32>
    %213 = arith.mulf %212, %153 : vector<4x128xf32>
    %214 = arith.addf %210, %213 : vector<4x128xf32>
    %cst_16 = arith.constant 0.000000e+00 : f32
    %215 = vector.broadcast %cst_16 : f32 to vector<4x128xf32>
    %216 = vector.extract_strided_slice %197 {offsets = [4, 0], sizes = [1, 128], strides = [1, 1]} : vector<16x128xf32> to vector<1x128xf32>
    %217 = vector.broadcast %216 : vector<1x128xf32> to vector<4x128xf32>
    %218 = arith.mulf %217, %102 : vector<4x128xf32>
    %219 = arith.addf %215, %218 : vector<4x128xf32>
    %220 = vector.extract_strided_slice %197 {offsets = [5, 0], sizes = [1, 128], strides = [1, 1]} : vector<16x128xf32> to vector<1x128xf32>
    %221 = vector.broadcast %220 : vector<1x128xf32> to vector<4x128xf32>
    %222 = arith.mulf %221, %119 : vector<4x128xf32>
    %223 = arith.addf %219, %222 : vector<4x128xf32>
    %224 = vector.extract_strided_slice %197 {offsets = [6, 0], sizes = [1, 128], strides = [1, 1]} : vector<16x128xf32> to vector<1x128xf32>
    %225 = vector.broadcast %224 : vector<1x128xf32> to vector<4x128xf32>
    %226 = arith.mulf %225, %136 : vector<4x128xf32>
    %227 = arith.addf %223, %226 : vector<4x128xf32>
    %228 = vector.extract_strided_slice %197 {offsets = [7, 0], sizes = [1, 128], strides = [1, 1]} : vector<16x128xf32> to vector<1x128xf32>
    %229 = vector.broadcast %228 : vector<1x128xf32> to vector<4x128xf32>
    %230 = arith.mulf %229, %153 : vector<4x128xf32>
    %231 = arith.addf %227, %230 : vector<4x128xf32>
    %cst_17 = arith.constant 0.000000e+00 : f32
    %232 = vector.broadcast %cst_17 : f32 to vector<4x128xf32>
    %233 = vector.extract_strided_slice %197 {offsets = [8, 0], sizes = [1, 128], strides = [1, 1]} : vector<16x128xf32> to vector<1x128xf32>
    %234 = vector.broadcast %233 : vector<1x128xf32> to vector<4x128xf32>
    %235 = arith.mulf %234, %102 : vector<4x128xf32>
    %236 = arith.addf %232, %235 : vector<4x128xf32>
    %237 = vector.extract_strided_slice %197 {offsets = [9, 0], sizes = [1, 128], strides = [1, 1]} : vector<16x128xf32> to vector<1x128xf32>
    %238 = vector.broadcast %237 : vector<1x128xf32> to vector<4x128xf32>
    %239 = arith.mulf %238, %119 : vector<4x128xf32>
    %240 = arith.addf %236, %239 : vector<4x128xf32>
    %241 = vector.extract_strided_slice %197 {offsets = [10, 0], sizes = [1, 128], strides = [1, 1]} : vector<16x128xf32> to vector<1x128xf32>
    %242 = vector.broadcast %241 : vector<1x128xf32> to vector<4x128xf32>
    %243 = arith.mulf %242, %136 : vector<4x128xf32>
    %244 = arith.addf %240, %243 : vector<4x128xf32>
    %245 = vector.extract_strided_slice %197 {offsets = [11, 0], sizes = [1, 128], strides = [1, 1]} : vector<16x128xf32> to vector<1x128xf32>
    %246 = vector.broadcast %245 : vector<1x128xf32> to vector<4x128xf32>
    %247 = arith.mulf %246, %153 : vector<4x128xf32>
    %248 = arith.addf %244, %247 : vector<4x128xf32>
    %cst_18 = arith.constant 0.000000e+00 : f32
    %249 = vector.broadcast %cst_18 : f32 to vector<4x128xf32>
    %250 = vector.extract_strided_slice %197 {offsets = [12, 0], sizes = [1, 128], strides = [1, 1]} : vector<16x128xf32> to vector<1x128xf32>
    %251 = vector.broadcast %250 : vector<1x128xf32> to vector<4x128xf32>
    %252 = arith.mulf %251, %102 : vector<4x128xf32>
    %253 = arith.addf %249, %252 : vector<4x128xf32>
    %254 = vector.extract_strided_slice %197 {offsets = [13, 0], sizes = [1, 128], strides = [1, 1]} : vector<16x128xf32> to vector<1x128xf32>
    %255 = vector.broadcast %254 : vector<1x128xf32> to vector<4x128xf32>
    %256 = arith.mulf %255, %119 : vector<4x128xf32>
    %257 = arith.addf %253, %256 : vector<4x128xf32>
    %258 = vector.extract_strided_slice %197 {offsets = [14, 0], sizes = [1, 128], strides = [1, 1]} : vector<16x128xf32> to vector<1x128xf32>
    %259 = vector.broadcast %258 : vector<1x128xf32> to vector<4x128xf32>
    %260 = arith.mulf %259, %136 : vector<4x128xf32>
    %261 = arith.addf %257, %260 : vector<4x128xf32>
    %262 = vector.extract_strided_slice %197 {offsets = [15, 0], sizes = [1, 128], strides = [1, 1]} : vector<16x128xf32> to vector<1x128xf32>
    %263 = vector.broadcast %262 : vector<1x128xf32> to vector<4x128xf32>
    %264 = arith.mulf %263, %153 : vector<4x128xf32>
    %265 = arith.addf %261, %264 : vector<4x128xf32>
    %266 = vector.extract_strided_slice %2 {offsets = [2, 0], sizes = [1, 128], strides = [1, 1]} : vector<3x128xf32> to vector<1x128xf32>
    %267 = vector.broadcast %266 : vector<1x128xf32> to vector<4x128xf32>
    %268 = arith.mulf %267, %214 : vector<4x128xf32>
    %269 = arith.addf %157, %268 : vector<4x128xf32>
    %270 = vector.broadcast %266 : vector<1x128xf32> to vector<4x128xf32>
    %271 = arith.mulf %270, %231 : vector<4x128xf32>
    %272 = arith.addf %160, %271 : vector<4x128xf32>
    %273 = vector.broadcast %266 : vector<1x128xf32> to vector<4x128xf32>
    %274 = arith.mulf %273, %248 : vector<4x128xf32>
    %275 = arith.addf %163, %274 : vector<4x128xf32>
    %276 = vector.broadcast %266 : vector<1x128xf32> to vector<4x128xf32>
    %277 = arith.mulf %276, %265 : vector<4x128xf32>
    %278 = arith.addf %166, %277 : vector<4x128xf32>
    %279 = tpu.concatenate %269, %272, %275, %278 in 0 : vector<4x128xf32>, vector<4x128xf32>, vector<4x128xf32>, vector<4x128xf32> -> vector<16x128xf32>
    %c0_19 = arith.constant 0 : index
    %c0_20 = arith.constant 0 : index
    %280 = vector.load %arg4[%c0_19, %c0_20] : memref<512x16xf32, #tpu.memory_space<vmem>>, vector<512x16xf32>
    %cst_21 = arith.constant dense<0.000000e+00> : vector<512x128xf32>
    %281 = tpu.matmul %280, %279, %cst_21 {dimension_numbers = #tpu.dot_dimension_numbers<[1], [0], [0], [1], [0, 0, 1, 1], [], []>} : vector<512x16xf32>, vector<16x128xf32>, vector<512x128xf32> -> vector<512x128xf32>
    %c0_22 = arith.constant 0 : index
    %c0_23 = arith.constant 0 : index
    %282 = vector.load %arg5[%c0_22, %c0_23] : memref<512x1xf32, #tpu.memory_space<vmem>>, vector<512x1xf32>
    %283 = vector.broadcast %282 : vector<512x1xf32> to vector<512x128xf32>
    %284 = arith.addf %281, %283 : vector<512x128xf32>
    %cst_24 = arith.constant 0.000000e+00 : f32
    %285 = vector.broadcast %cst_24 : f32 to vector<512x128xf32>
    %286 = arith.maximumf %284, %285 : vector<512x128xf32>
    %287 = arith.truncf %286 : vector<512x128xf32> to vector<512x128xbf16>
    %c0_25 = arith.constant 0 : index
    %c0_26 = arith.constant 0 : index
    %288 = vector.load %arg6[%c0_25, %c0_26] : memref<256x512xbf16, #tpu.memory_space<vmem>>, vector<256x512xbf16>
    %cst_27 = arith.constant dense<0.000000e+00> : vector<256x128xf32>
    %289 = tpu.matmul %288, %287, %cst_27 {dimension_numbers = #tpu.dot_dimension_numbers<[1], [0], [0], [1], [0, 0, 1, 1], [], []>} : vector<256x512xbf16>, vector<512x128xbf16>, vector<256x128xf32> -> vector<256x128xf32>
    %c0_28 = arith.constant 0 : index
    %c0_29 = arith.constant 0 : index
    %290 = vector.load %arg7[%c0_28, %c0_29] : memref<256x1xf32, #tpu.memory_space<vmem>>, vector<256x1xf32>
    %291 = vector.broadcast %290 : vector<256x1xf32> to vector<256x128xf32>
    %292 = arith.addf %289, %291 : vector<256x128xf32>
    %cst_30 = arith.constant 0.000000e+00 : f32
    %293 = vector.broadcast %cst_30 : f32 to vector<256x128xf32>
    %294 = arith.maximumf %292, %293 : vector<256x128xf32>
    %295 = arith.truncf %294 : vector<256x128xf32> to vector<256x128xbf16>
    %c0_31 = arith.constant 0 : index
    %c0_32 = arith.constant 0 : index
    %296 = vector.load %arg8[%c0_31, %c0_32] : memref<8x256xbf16, #tpu.memory_space<vmem>>, vector<8x256xbf16>
    %cst_33 = arith.constant dense<0.000000e+00> : vector<8x128xf32>
    %297 = tpu.matmul %296, %295, %cst_33 {dimension_numbers = #tpu.dot_dimension_numbers<[1], [0], [0], [1], [0, 0, 1, 1], [], []>} : vector<8x256xbf16>, vector<256x128xbf16>, vector<8x128xf32> -> vector<8x128xf32>
    %c0_34 = arith.constant 0 : index
    %c0_35 = arith.constant 0 : index
    %298 = vector.load %arg9[%c0_34, %c0_35] : memref<8x1xf32, #tpu.memory_space<vmem>>, vector<8x1xf32>
    %299 = vector.broadcast %298 : vector<8x1xf32> to vector<8x128xf32>
    %300 = arith.addf %297, %299 : vector<8x128xf32>
    %c0_36 = arith.constant 0 : index
    %c0_37 = arith.constant 0 : index
    %301 = vector.load %arg10[%c0_36, %c0_37] : memref<8x128xf32, #tpu.memory_space<vmem>>, vector<8x128xf32>
    tpu.vector_store %arg10[%c0_36, %c0_37], %300 {strides = array<i32>} : memref<8x128xf32, #tpu.memory_space<vmem>>, vector<8x128xf32>,
    return
  }
  func.func @transform_0(%arg0: i32) -> (i32, i32) {
    %c0_i32 = arith.constant 0 : i32
    %c0_i32_0 = arith.constant 0 : i32
    return %c0_i32, %arg0 : i32, i32
  }
  func.func @transform_1(%arg0: i32) -> (i32, i32) {
    %c0_i32 = arith.constant 0 : i32
    %c0_i32_0 = arith.constant 0 : i32
    return %c0_i32, %arg0 : i32, i32
  }
  func.func @transform_2(%arg0: i32) -> (i32, i32) {
    %c0_i32 = arith.constant 0 : i32
    %c0_i32_0 = arith.constant 0 : i32
    return %c0_i32, %arg0 : i32, i32
  }
  func.func @transform_3(%arg0: i32) -> (i32, i32) {
    %c0_i32 = arith.constant 0 : i32
    %c0_i32_0 = arith.constant 0 : i32
    %c0_i32_1 = arith.constant 0 : i32
    return %c0_i32, %c0_i32_0 : i32, i32
  }
  func.func @transform_4(%arg0: i32) -> (i32, i32) {
    %c0_i32 = arith.constant 0 : i32
    %c0_i32_0 = arith.constant 0 : i32
    %c0_i32_1 = arith.constant 0 : i32
    return %c0_i32, %c0_i32_0 : i32, i32
  }
  func.func @transform_5(%arg0: i32) -> (i32, i32) {
    %c0_i32 = arith.constant 0 : i32
    %c0_i32_0 = arith.constant 0 : i32
    %c0_i32_1 = arith.constant 0 : i32
    return %c0_i32, %c0_i32_0 : i32, i32
  }
  func.func @transform_6(%arg0: i32) -> (i32, i32) {
    %c0_i32 = arith.constant 0 : i32
    %c0_i32_0 = arith.constant 0 : i32
    %c0_i32_1 = arith.constant 0 : i32
    return %c0_i32, %c0_i32_0 : i32, i32
  }
  func.func @transform_7(%arg0: i32) -> (i32, i32) {
    %c0_i32 = arith.constant 0 : i32
    %c0_i32_0 = arith.constant 0 : i32
    %c0_i32_1 = arith.constant 0 : i32
    return %c0_i32, %c0_i32_0 : i32, i32
  }
  func.func @transform_8(%arg0: i32) -> (i32, i32) {
    %c0_i32 = arith.constant 0 : i32
    %c0_i32_0 = arith.constant 0 : i32
    %c0_i32_1 = arith.constant 0 : i32
    return %c0_i32, %c0_i32_0 : i32, i32
  }
  func.func @transform_9(%arg0: i32) -> (i32, i32) {
    %c0_i32 = arith.constant 0 : i32
    %c0_i32_0 = arith.constant 0 : i32
    return %c0_i32, %arg0 : i32, i32
  }
}

</mosaic_0001>

<llo_original>
// kernel: tpu_custom_call.1
$region0: #{tpu_custom_call.1}
  #allocation0 [shape = 'u32[]', space=smem, size = 0x4, offset = 0x4, fixed_abs, tag = 'smem constant byte address 0x4 - core index']
  #allocation1 [shape = 'u32[144,128]{1,0:T(1,128)}', space=vmem, size = 0x12000, scoped, tag = 'internal scratch']
  %s0 = inlined_call_operand.vmem [shape: f32[96,128], index: 0, kind: input, shape index: {}]
  %s1 = inlined_call_operand.vmem [shape: f32[18,128], index: 1, kind: input, shape index: {}]
  %s2 = inlined_call_operand.vmem [shape: f32[3,128], index: 2, kind: input, shape index: {}]
  %s3 = inlined_call_operand.vmem [shape: f32[512,16], index: 3, kind: input, shape index: {}]
  %s4 = inlined_call_operand.vmem [shape: f32[512,1], index: 4, kind: input, shape index: {}]
  %s5 = inlined_call_operand.vmem [shape: bf16[256,512], index: 5, kind: input, shape index: {}]
  %s6 = inlined_call_operand.vmem [shape: f32[256,1], index: 6, kind: input, shape index: {}]
  %s7 = inlined_call_operand.vmem [shape: bf16[8,256], index: 7, kind: input, shape index: {}]
  %s8 = inlined_call_operand.vmem [shape: f32[8,1], index: 8, kind: input, shape index: {}]
  %s9 = inlined_call_operand.hbm [shape: f32[8,128], index: 9, kind: output, shape index: {}]
  %s10 = sld [smem:[#allocation0]]
  $region46: #{tpu_custom_call.1} parent=0
    _
  %s12 = ssub.s32 1, %s10
  %s13 = scalar_select 0, %s12, %s10
  $region1: #{tpu_custom_call.1} parent=0
    #allocation2 [shape = 'u8[4096]{0}', space=vmem, size = 0x1000, scoped, tag = 'output window, operand 0, single buffered']
    #allocation3 [shape = 's32[1]{0}', space=sflag, size = 0x4, scoped, tag = 'scoped memory for tpu_custom_call.1']
    %14 = vsyncpa [#allocation3], 0
    // Predicated region
    $region2: #{tpu_custom_call.1} parent=1 // pred_check
      _
    $region3: #{tpu_custom_call.1} parent=1 // pred_check_branch
      %16 = sbr.rel (0) target = $region5
    $region4: #{tpu_custom_call.1} parent=1 // pred_region
      _
    $region5: #{tpu_custom_call.1} parent=1 // pred_fallthru
      _
    // Predicated region
    $region6: #{tpu_custom_call.1} parent=1 // pred_check
      _
    $region7: #{tpu_custom_call.1} parent=1 // pred_check_branch
      %18 = sbr.rel (0) target = $region9
    $region8: #{tpu_custom_call.1} parent=1 // pred_region
      _
    $region9: #{tpu_custom_call.1} parent=1 // pred_fallthru
      _
    // Predicated region
    $region10: #{tpu_custom_call.1} parent=1 // pred_check
      _
    $region11: #{tpu_custom_call.1} parent=1 // pred_check_branch
      %20 = sbr.rel (0) target = $region13
    $region12: #{tpu_custom_call.1} parent=1 // pred_region
      _
    $region13: #{tpu_custom_call.1} parent=1 // pred_fallthru
      _
    // Predicated region
    $region14: #{tpu_custom_call.1} parent=1 // pred_check
      _
    $region15: #{tpu_custom_call.1} parent=1 // pred_check_branch
      %22 = sbr.rel (0) target = $region17
    $region16: #{tpu_custom_call.1} parent=1 // pred_region
      _
    $region17: #{tpu_custom_call.1} parent=1 // pred_fallthru
      _
    // Predicated region
    $region18: #{tpu_custom_call.1} parent=1 // pred_check
      _
    $region19: #{tpu_custom_call.1} parent=1 // pred_check_branch
      %24 = sbr.rel (0) target = $region21
    $region20: #{tpu_custom_call.1} parent=1 // pred_region
      _
    $region21: #{tpu_custom_call.1} parent=1 // pred_fallthru
      _
    // Predicated region
    $region22: #{tpu_custom_call.1} parent=1 // pred_check
      _
    $region23: #{tpu_custom_call.1} parent=1 // pred_check_branch
      %26 = sbr.rel (0) target = $region25
    $region24: #{tpu_custom_call.1} parent=1 // pred_region
      _
    $region25: #{tpu_custom_call.1} parent=1 // pred_fallthru
      _
    // Predicated region
    $region26: #{tpu_custom_call.1} parent=1 // pred_check
      _
    $region27: #{tpu_custom_call.1} parent=1 // pred_check_branch
      %28 = sbr.rel (0) target = $region29
    $region28: #{tpu_custom_call.1} parent=1 // pred_region
      _
    $region29: #{tpu_custom_call.1} parent=1 // pred_fallthru
      _
    // Predicated region
    $region30: #{tpu_custom_call.1} parent=1 // pred_check
      _
    $region31: #{tpu_custom_call.1} parent=1 // pred_check_branch
      %30 = sbr.rel (0) target = $region33
    $region32: #{tpu_custom_call.1} parent=1 // pred_region
      _
    $region33: #{tpu_custom_call.1} parent=1 // pred_fallthru
      _
    // Predicated region
    $region34: #{tpu_custom_call.1} parent=1 // pred_check
      _
    $region35: #{tpu_custom_call.1} parent=1 // pred_check_branch
      %32 = sbr.rel (0) target = $region37
    $region36: #{tpu_custom_call.1} parent=1 // pred_region
      _
    $region37: #{tpu_custom_call.1} parent=1 // pred_fallthru
      _
    %v34 = vld [vmem:[%s0] sm:$0xff]
    %v35 = vld [vmem:[%s0 + $0x8] sm:$0xff]
    %v36 = vld [vmem:[%s0 + $0x10] sm:$0xff]
    %v37 = vld [vmem:[%s0 + $0x18] sm:$0xff]
    %v38 = vld [vmem:[%s0 + $0x20] sm:$0xff]
    %v39 = vld [vmem:[%s0 + $0x28] sm:$0xff]
    %v40 = vld [vmem:[%s0 + $0x30] sm:$0xff]
    %v41 = vld [vmem:[%s0 + $0x38] sm:$0xff]
    %v42 = vld [vmem:[%s0 + $0x40] sm:$0xff]
    %v43 = vld [vmem:[%s0 + $0x48] sm:$0xff]
    %v44 = vld [vmem:[%s0 + $0x50] sm:$0xff]
    %v45 = vld [vmem:[%s0 + $0x58] sm:$0xff]
    %v46 = vld [vmem:[%s1] sm:$0xff]
    %v47 = vld [vmem:[%s1 + $0x8] sm:$0xff]
    %v48 = vld [vmem:[%s1 + $0x10] sm:$0x3]
    %v49 = vld [vmem:[%s2] sm:$0x7]
    %v50 = vlaneseq
    %v51 = vshrl.u32 %v50, 7
    %v52 = vsub.s32 0, %v51
    %v53 = vrot.slane %v46, %v52
    %v54 = vmul.f32 %v53, %v34
    %v55 = vmul.f32 %v53, %v35
    %v56 = vadd.f32 %v54, 0.0
    %v57 = vadd.f32 %v55, 0.0
    %v58 = vlaneseq
    %v59 = vshrl.u32 %v58, 7
    %v60 = vsub.s32 1, %v59
    %v61 = vrot.slane %v46, %v60
    %v62 = vmul.f32 %v61, %v36
    %v63 = vmul.f32 %v61, %v37
    %v64 = vadd.f32 %v56, %v62
    %v65 = vadd.f32 %v57, %v63
    %v66 = vlaneseq
    %v67 = vshrl.u32 %v66, 7
    %v68 = vsub.s32 2, %v67
    %v69 = vrot.slane %v46, %v68
    %v70 = vmul.f32 %v69, %v38
    %v71 = vmul.f32 %v69, %v39
    %v72 = vadd.f32 %v64, %v70
    %v73 = vadd.f32 %v65, %v71
    %v74 = vlaneseq
    %v75 = vshrl.u32 %v74, 7
    %v76 = vsub.s32 3, %v75
    %v77 = vrot.slane %v46, %v76
    %v78 = vmul.f32 %v77, %v40
    %v79 = vmul.f32 %v77, %v41
    %v80 = vadd.f32 %v72, %v78
    %v81 = vadd.f32 %v73, %v79
    %v82 = vlaneseq
    %v83 = vshrl.u32 %v82, 7
    %v84 = vsub.s32 4, %v83
    %v85 = vrot.slane %v46, %v84
    %v86 = vmul.f32 %v85, %v42
    %v87 = vmul.f32 %v85, %v43
    %v88 = vadd.f32 %v80, %v86
    %v89 = vadd.f32 %v81, %v87
    %v90 = vlaneseq
    %v91 = vshrl.u32 %v90, 7
    %v92 = vsub.s32 5, %v91
    %v93 = vrot.slane %v46, %v92
    %v94 = vmul.f32 %v93, %v44
    %v95 = vmul.f32 %v93, %v45
    %v96 = vadd.f32 %v88, %v94
    %v97 = vadd.f32 %v89, %v95
    %v98 = vlaneseq
    %v99 = vshrl.u32 %v98, 7
    %v100 = vsub.s32 0, %v99
    %v101 = vrot.slane %v49, %v100
    %v102 = vmul.f32 %v101, %v96
    %v103 = vadd.f32 %v102, 0.0
    %v104 = vmul.f32 %v101, %v97
    %v105 = vadd.f32 %v104, 0.0
    %v106 = vlaneseq
    %v107 = vshrl.u32 %v106, 7
    %v108 = vsub.s32 6, %v107
    %v109 = vrot.slane %v46, %v108
    %v110 = vmul.f32 %v109, %v34
    %v111 = vmul.f32 %v109, %v35
    %v112 = vadd.f32 %v110, 0.0
    %v113 = vadd.f32 %v111, 0.0
    %v114 = vlaneseq
    %v115 = vshrl.u32 %v114, 7
    %v116 = vsub.s32 7, %v115
    %v117 = vrot.slane %v46, %v116
    %v118 = vmul.f32 %v117, %v36
    %v119 = vmul.f32 %v117, %v37
    %v120 = vadd.f32 %v112, %v118
    %v121 = vadd.f32 %v113, %v119
    %v122 = vlaneseq
    %v123 = vshrl.u32 %v122, 7
    %v124 = vsub.s32 0, %v123
    %v125 = vrot.slane %v47, %v124
    %v126 = vmul.f32 %v125, %v38
    %v127 = vmul.f32 %v125, %v39
    %v128 = vadd.f32 %v120, %v126
    %v129 = vadd.f32 %v121, %v127
    %v130 = vlaneseq
    %v131 = vshrl.u32 %v130, 7
    %v132 = vsub.s32 1, %v131
    %v133 = vrot.slane %v47, %v132
    %v134 = vmul.f32 %v133, %v40
    %v135 = vmul.f32 %v133, %v41
    %v136 = vadd.f32 %v128, %v134
    %v137 = vadd.f32 %v129, %v135
    %v138 = vlaneseq
    %v139 = vshrl.u32 %v138, 7
    %v140 = vsub.s32 2, %v139
    %v141 = vrot.slane %v47, %v140
    %v142 = vmul.f32 %v141, %v42
    %v143 = vmul.f32 %v141, %v43
    %v144 = vadd.f32 %v136, %v142
    %v145 = vadd.f32 %v137, %v143
    %v146 = vlaneseq
    %v147 = vshrl.u32 %v146, 7
    %v148 = vsub.s32 3, %v147
    %v149 = vrot.slane %v47, %v148
    %v150 = vmul.f32 %v149, %v44
    %v151 = vmul.f32 %v149, %v45
    %v152 = vadd.f32 %v144, %v150
    %v153 = vadd.f32 %v145, %v151
    %v154 = vlaneseq
    %v155 = vshrl.u32 %v154, 7
    %v156 = vsub.s32 0, %v155
    %v157 = vrot.slane %v152, %v156
    %v158 = vmul.f32 %v157, %v96
    %v159 = vadd.f32 %v158, 0.0
    %v160 = vlaneseq
    %v161 = vshrl.u32 %v160, 7
    %v162 = vsub.s32 1, %v161
    %v163 = vrot.slane %v152, %v162
    %v164 = vmul.f32 %v163, %v96
    %v166 = vrot.slane %v164, 4
    %v168 = vadd.f32 %v159, %v166
    %v169 = vlaneseq
    %v170 = vshrl.u32 %v169, 7
    %v171 = vsub.s32 2, %v170
    %v172 = vrot.slane %v152, %v171
    %v173 = vmul.f32 %v172, %v97
    %v174 = vadd.f32 %v168, %v173
    %v175 = vlaneseq
    %v176 = vshrl.u32 %v175, 7
    %v177 = vsub.s32 3, %v176
    %v178 = vrot.slane %v152, %v177
    %v179 = vmul.f32 %v178, %v97
    %v181 = vrot.slane %v179, 4
    %v183 = vadd.f32 %v174, %v181
    %v184 = vlaneseq
    %v185 = vshrl.u32 %v184, 7
    %v186 = vsub.s32 4, %v185
    %v187 = vrot.slane %v152, %v186
    %v188 = vmul.f32 %v187, %v96
    %v189 = vadd.f32 %v188, 0.0
    %v190 = vlaneseq
    %v191 = vshrl.u32 %v190, 7
    %v192 = vsub.s32 5, %v191
    %v193 = vrot.slane %v152, %v192
    %v194 = vmul.f32 %v193, %v96
    %v196 = vrot.slane %v194, 4
    %v198 = vadd.f32 %v189, %v196
    %v199 = vlaneseq
    %v200 = vshrl.u32 %v199, 7
    %v201 = vsub.s32 6, %v200
    %v202 = vrot.slane %v152, %v201
    %v203 = vmul.f32 %v202, %v97
    %v204 = vadd.f32 %v198, %v203
    %v205 = vlaneseq
    %v206 = vshrl.u32 %v205, 7
    %v207 = vsub.s32 7, %v206
    %v208 = vrot.slane %v152, %v207
    %v209 = vmul.f32 %v208, %v97
    %v211 = vrot.slane %v209, 4
    %v213 = vadd.f32 %v204, %v211
    %v214 = vlaneseq
    %v215 = vshrl.u32 %v214, 7
    %v216 = vsub.s32 0, %v215
    %v217 = vrot.slane %v153, %v216
    %v218 = vmul.f32 %v217, %v96
    %v219 = vadd.f32 %v218, 0.0
    %v220 = vlaneseq
    %v221 = vshrl.u32 %v220, 7
    %v222 = vsub.s32 1, %v221
    %v223 = vrot.slane %v153, %v222
    %v224 = vmul.f32 %v223, %v96
    %v226 = vrot.slane %v224, 4
    %v228 = vadd.f32 %v219, %v226
    %v229 = vlaneseq
    %v230 = vshrl.u32 %v229, 7
    %v231 = vsub.s32 2, %v230
    %v232 = vrot.slane %v153, %v231
    %v233 = vmul.f32 %v232, %v97
    %v234 = vadd.f32 %v228, %v233
    %v235 = vlaneseq
    %v236 = vshrl.u32 %v235, 7
    %v237 = vsub.s32 3, %v236
    %v238 = vrot.slane %v153, %v237
    %v239 = vmul.f32 %v238, %v97
    %v241 = vrot.slane %v239, 4
    %v243 = vadd.f32 %v234, %v241
    %v244 = vlaneseq
    %v245 = vshrl.u32 %v244, 7
    %v246 = vsub.s32 4, %v245
    %v247 = vrot.slane %v153, %v246
    %v248 = vmul.f32 %v247, %v96
    %v249 = vadd.f32 %v248, 0.0
    %v250 = vlaneseq
    %v251 = vshrl.u32 %v250, 7
    %v252 = vsub.s32 5, %v251
    %v253 = vrot.slane %v153, %v252
    %v254 = vmul.f32 %v253, %v96
    %v256 = vrot.slane %v254, 4
    %v258 = vadd.f32 %v249, %v256
    %v259 = vlaneseq
    %v260 = vshrl.u32 %v259, 7
    %v261 = vsub.s32 6, %v260
    %v262 = vrot.slane %v153, %v261
    %v263 = vmul.f32 %v262, %v97
    %v264 = vadd.f32 %v258, %v263
    %v265 = vlaneseq
    %v266 = vshrl.u32 %v265, 7
    %v267 = vsub.s32 7, %v266
    %v268 = vrot.slane %v153, %v267
    %v269 = vmul.f32 %v268, %v97
    %v271 = vrot.slane %v269, 4
    %v273 = vadd.f32 %v264, %v271
    %v274 = vlaneseq
    %v275 = vshrl.u32 %v274, 7
    %v276 = vsub.s32 1, %v275
    %v277 = vrot.slane %v49, %v276
    %v278 = vmul.f32 %v277, %v183
    %v279 = vadd.f32 %v103, %v278
    %v280 = vmul.f32 %v277, %v213
    %v282 = vrot.slane %v280, 4
    %v284 = vadd.f32 %v103, %v282
    %v285 = vmul.f32 %v277, %v243
    %v286 = vadd.f32 %v105, %v285
    %v287 = vmul.f32 %v277, %v273
    %v289 = vrot.slane %v287, 4
    %v291 = vadd.f32 %v105, %v289
    %v292 = vlaneseq
    %v293 = vshrl.u32 %v292, 7
    %v294 = vsub.s32 4, %v293
    %v295 = vrot.slane %v47, %v294
    %v296 = vmul.f32 %v295, %v34
    %v297 = vmul.f32 %v295, %v35
    %v298 = vadd.f32 %v296, 0.0
    %v299 = vadd.f32 %v297, 0.0
    %v300 = vlaneseq
    %v301 = vshrl.u32 %v300, 7
    %v302 = vsub.s32 5, %v301
    %v303 = vrot.slane %v47, %v302
    %v304 = vmul.f32 %v303, %v36
    %v305 = vmul.f32 %v303, %v37
    %v306 = vadd.f32 %v298, %v304
    %v307 = vadd.f32 %v299, %v305
    %v308 = vlaneseq
    %v309 = vshrl.u32 %v308, 7
    %v310 = vsub.s32 6, %v309
    %v311 = vrot.slane %v47, %v310
    %v312 = vmul.f32 %v311, %v38
    %v313 = vmul.f32 %v311, %v39
    %v314 = vadd.f32 %v306, %v312
    %v315 = vadd.f32 %v307, %v313
    %v316 = vlaneseq
    %v317 = vshrl.u32 %v316, 7
    %v318 = vsub.s32 7, %v317
    %v319 = vrot.slane %v47, %v318
    %v320 = vmul.f32 %v319, %v40
    %v321 = vmul.f32 %v319, %v41
    %v322 = vadd.f32 %v314, %v320
    %v323 = vadd.f32 %v315, %v321
    %v324 = vlaneseq
    %v325 = vshrl.u32 %v324, 7
    %v326 = vsub.s32 0, %v325
    %v327 = vrot.slane %v48, %v326
    %v328 = vmul.f32 %v327, %v42
    %v329 = vmul.f32 %v327, %v43
    %v330 = vadd.f32 %v322, %v328
    %v331 = vadd.f32 %v323, %v329
    %v332 = vlaneseq
    %v333 = vshrl.u32 %v332, 7
    %v334 = vsub.s32 1, %v333
    %v335 = vrot.slane %v48, %v334
    %v336 = vmul.f32 %v335, %v44
    %v337 = vmul.f32 %v335, %v45
    %v338 = vadd.f32 %v330, %v336
    %v339 = vadd.f32 %v331, %v337
    %v340 = vlaneseq
    %v341 = vshrl.u32 %v340, 7
    %v342 = vsub.s32 0, %v341
    %v343 = vrot.slane %v338, %v342
    %v344 = vmul.f32 %v343, %v183
    %v345 = vadd.f32 %v344, 0.0
    %v346 = vlaneseq
    %v347 = vshrl.u32 %v346, 7
    %v348 = vsub.s32 1, %v347
    %v349 = vrot.slane %v338, %v348
    %v350 = vmul.f32 %v349, %v213
    %v351 = vadd.f32 %v345, %v350
    %v352 = vlaneseq
    %v353 = vshrl.u32 %v352, 7
    %v354 = vsub.s32 2, %v353
    %v355 = vrot.slane %v338, %v354
    %v356 = vmul.f32 %v355, %v243
    %v357 = vadd.f32 %v351, %v356
    %v358 = vlaneseq
    %v359 = vshrl.u32 %v358, 7
    %v360 = vsub.s32 3, %v359
    %v361 = vrot.slane %v338, %v360
    %v362 = vmul.f32 %v361, %v273
    %v363 = vadd.f32 %v357, %v362
    %v364 = vlaneseq
    %v365 = vshrl.u32 %v364, 7
    %v366 = vsub.s32 4, %v365
    %v367 = vrot.slane %v338, %v366
    %v368 = vmul.f32 %v367, %v183
    %v369 = vadd.f32 %v368, 0.0
    %v370 = vlaneseq
    %v371 = vshrl.u32 %v370, 7
    %v372 = vsub.s32 5, %v371
    %v373 = vrot.slane %v338, %v372
    %v374 = vmul.f32 %v373, %v213
    %v375 = vadd.f32 %v369, %v374
    %v376 = vlaneseq
    %v377 = vshrl.u32 %v376, 7
    %v378 = vsub.s32 6, %v377
    %v379 = vrot.slane %v338, %v378
    %v380 = vmul.f32 %v379, %v243
    %v381 = vadd.f32 %v375, %v380
    %v382 = vlaneseq
    %v383 = vshrl.u32 %v382, 7
    %v384 = vsub.s32 7, %v383
    %v385 = vrot.slane %v338, %v384
    %v386 = vmul.f32 %v385, %v273
    %v387 = vadd.f32 %v381, %v386
    %v388 = vlaneseq
    %v389 = vshrl.u32 %v388, 7
    %v390 = vsub.s32 0, %v389
    %v391 = vrot.slane %v339, %v390
    %v392 = vmul.f32 %v391, %v183
    %v393 = vadd.f32 %v392, 0.0
    %v394 = vlaneseq
    %v395 = vshrl.u32 %v394, 7
    %v396 = vsub.s32 1, %v395
    %v397 = vrot.slane %v339, %v396
    %v398 = vmul.f32 %v397, %v213
    %v399 = vadd.f32 %v393, %v398
    %v400 = vlaneseq
    %v401 = vshrl.u32 %v400, 7
    %v402 = vsub.s32 2, %v401
    %v403 = vrot.slane %v339, %v402
    %v404 = vmul.f32 %v403, %v243
    %v405 = vadd.f32 %v399, %v404
    %v406 = vlaneseq
    %v407 = vshrl.u32 %v406, 7
    %v408 = vsub.s32 3, %v407
    %v409 = vrot.slane %v339, %v408
    %v410 = vmul.f32 %v409, %v273
    %v411 = vadd.f32 %v405, %v410
    %v412 = vlaneseq
    %v413 = vshrl.u32 %v412, 7
    %v414 = vsub.s32 4, %v413
    %v415 = vrot.slane %v339, %v414
    %v416 = vmul.f32 %v415, %v183
    %v417 = vadd.f32 %v416, 0.0
    %v418 = vlaneseq
    %v419 = vshrl.u32 %v418, 7
    %v420 = vsub.s32 5, %v419
    %v421 = vrot.slane %v339, %v420
    %v422 = vmul.f32 %v421, %v213
    %v423 = vadd.f32 %v417, %v422
    %v424 = vlaneseq
    %v425 = vshrl.u32 %v424, 7
    %v426 = vsub.s32 6, %v425
    %v427 = vrot.slane %v339, %v426
    %v428 = vmul.f32 %v427, %v243
    %v429 = vadd.f32 %v423, %v428
    %v430 = vlaneseq
    %v431 = vshrl.u32 %v430, 7
    %v432 = vsub.s32 7, %v431
    %v433 = vrot.slane %v339, %v432
    %v434 = vmul.f32 %v433, %v273
    %v435 = vadd.f32 %v429, %v434
    %v436 = vlaneseq
    %v437 = vshrl.u32 %v436, 7
    %v438 = vsub.s32 2, %v437
    %v439 = vrot.slane %v49, %v438
    %v440 = vmul.f32 %v439, %v363
    %v441 = vadd.f32 %v279, %v440
    %v442 = vmul.f32 %v439, %v387
    %v444 = vrot.slane %v442, 4
    %v446 = vadd.f32 %v284, %v444
    %v447 = vmul.f32 %v439, %v411
    %v448 = vadd.f32 %v286, %v447
    %v449 = vmul.f32 %v439, %v435
    %v451 = vrot.slane %v449, 4
    %v453 = vadd.f32 %v291, %v451
    %vm454 = vcmask 1043456
    %v455 = vsel %vm454, %v441, %v446
    %v456 = vsel %vm454, %v448, %v453
    %v457 = vld [vmem:[%s3] sm:$0xff]
    %v458 = vld [vmem:[%s3 + $0x8] sm:$0xff]
    %v459 = vld [vmem:[%s3 + $0x10] sm:$0xff]
    %v460 = vld [vmem:[%s3 + $0x18] sm:$0xff]
    %v461 = vld [vmem:[%s3 + $0x20] sm:$0xff]
    %v462 = vld [vmem:[%s3 + $0x28] sm:$0xff]
    %v463 = vld [vmem:[%s3 + $0x30] sm:$0xff]
    %v464 = vld [vmem:[%s3 + $0x38] sm:$0xff]
    %v465 = vld [vmem:[%s3 + $0x40] sm:$0xff]
    %v466 = vld [vmem:[%s3 + $0x48] sm:$0xff]
    %v467 = vld [vmem:[%s3 + $0x50] sm:$0xff]
    %v468 = vld [vmem:[%s3 + $0x58] sm:$0xff]
    %v469 = vld [vmem:[%s3 + $0x60] sm:$0xff]
    %v470 = vld [vmem:[%s3 + $0x68] sm:$0xff]
    %v471 = vld [vmem:[%s3 + $0x70] sm:$0xff]
    %v472 = vld [vmem:[%s3 + $0x78] sm:$0xff]
    %v473 = vld [vmem:[%s3 + $0x80] sm:$0xff]
    %v474 = vld [vmem:[%s3 + $0x88] sm:$0xff]
    %v475 = vld [vmem:[%s3 + $0x90] sm:$0xff]
    %v476 = vld [vmem:[%s3 + $0x98] sm:$0xff]
    %v477 = vld [vmem:[%s3 + $0xa0] sm:$0xff]
    %v478 = vld [vmem:[%s3 + $0xa8] sm:$0xff]
    %v479 = vld [vmem:[%s3 + $0xb0] sm:$0xff]
    %v480 = vld [vmem:[%s3 + $0xb8] sm:$0xff]
    %v481 = vld [vmem:[%s3 + $0xc0] sm:$0xff]
    %v482 = vld [vmem:[%s3 + $0xc8] sm:$0xff]
    %v483 = vld [vmem:[%s3 + $0xd0] sm:$0xff]
    %v484 = vld [vmem:[%s3 + $0xd8] sm:$0xff]
    %v485 = vld [vmem:[%s3 + $0xe0] sm:$0xff]
    %v486 = vld [vmem:[%s3 + $0xe8] sm:$0xff]
    %v487 = vld [vmem:[%s3 + $0xf0] sm:$0xff]
    %v488 = vld [vmem:[%s3 + $0xf8] sm:$0xff]
    %v489 = vld [vmem:[%s3 + $0x100] sm:$0xff]
    %v490 = vld [vmem:[%s3 + $0x108] sm:$0xff]
    %v491 = vld [vmem:[%s3 + $0x110] sm:$0xff]
    %v492 = vld [vmem:[%s3 + $0x118] sm:$0xff]
    %v493 = vld [vmem:[%s3 + $0x120] sm:$0xff]
    %v494 = vld [vmem:[%s3 + $0x128] sm:$0xff]
    %v495 = vld [vmem:[%s3 + $0x130] sm:$0xff]
    %v496 = vld [vmem:[%s3 + $0x138] sm:$0xff]
    %v497 = vld [vmem:[%s3 + $0x140] sm:$0xff]
    %v498 = vld [vmem:[%s3 + $0x148] sm:$0xff]
    %v499 = vld [vmem:[%s3 + $0x150] sm:$0xff]
    %v500 = vld [vmem:[%s3 + $0x158] sm:$0xff]
    %v501 = vld [vmem:[%s3 + $0x160] sm:$0xff]
    %v502 = vld [vmem:[%s3 + $0x168] sm:$0xff]
    %v503 = vld [vmem:[%s3 + $0x170] sm:$0xff]
    %v504 = vld [vmem:[%s3 + $0x178] sm:$0xff]
    %v505 = vld [vmem:[%s3 + $0x180] sm:$0xff]
    %v506 = vld [vmem:[%s3 + $0x188] sm:$0xff]
    %v507 = vld [vmem:[%s3 + $0x190] sm:$0xff]
    %v508 = vld [vmem:[%s3 + $0x198] sm:$0xff]
    %v509 = vld [vmem:[%s3 + $0x1a0] sm:$0xff]
    %v510 = vld [vmem:[%s3 + $0x1a8] sm:$0xff]
    %v511 = vld [vmem:[%s3 + $0x1b0] sm:$0xff]
    %v512 = vld [vmem:[%s3 + $0x1b8] sm:$0xff]
    %v513 = vld [vmem:[%s3 + $0x1c0] sm:$0xff]
    %v514 = vld [vmem:[%s3 + $0x1c8] sm:$0xff]
    %v515 = vld [vmem:[%s3 + $0x1d0] sm:$0xff]
    %v516 = vld [vmem:[%s3 + $0x1d8] sm:$0xff]
    %v517 = vld [vmem:[%s3 + $0x1e0] sm:$0xff]
    %v518 = vld [vmem:[%s3 + $0x1e8] sm:$0xff]
    %v519 = vld [vmem:[%s3 + $0x1f0] sm:$0xff]
    %v520 = vld [vmem:[%s3 + $0x1f8] sm:$0xff]
    %v521 = vld [vmem:[%s4] sm:$0xff]
    %v522 = vld [vmem:[%s4 + $0x8] sm:$0xff]
    %v523 = vld [vmem:[%s4 + $0x10] sm:$0xff]
    %v524 = vld [vmem:[%s4 + $0x18] sm:$0xff]
    %v525 = vld [vmem:[%s4 + $0x20] sm:$0xff]
    %v526 = vld [vmem:[%s4 + $0x28] sm:$0xff]
    %v527 = vld [vmem:[%s4 + $0x30] sm:$0xff]
    %v528 = vld [vmem:[%s4 + $0x38] sm:$0xff]
    %v529 = vld [vmem:[%s4 + $0x40] sm:$0xff]
    %v530 = vld [vmem:[%s4 + $0x48] sm:$0xff]
    %v531 = vld [vmem:[%s4 + $0x50] sm:$0xff]
    %v532 = vld [vmem:[%s4 + $0x58] sm:$0xff]
    %v533 = vld [vmem:[%s4 + $0x60] sm:$0xff]
    %v534 = vld [vmem:[%s4 + $0x68] sm:$0xff]
    %v535 = vld [vmem:[%s4 + $0x70] sm:$0xff]
    %v536 = vld [vmem:[%s4 + $0x78] sm:$0xff]
    %v537 = vld [vmem:[%s4 + $0x80] sm:$0xff]
    %v538 = vld [vmem:[%s4 + $0x88] sm:$0xff]
    %v539 = vld [vmem:[%s4 + $0x90] sm:$0xff]
    %v540 = vld [vmem:[%s4 + $0x98] sm:$0xff]
    %v541 = vld [vmem:[%s4 + $0xa0] sm:$0xff]
    %v542 = vld [vmem:[%s4 + $0xa8] sm:$0xff]
    %v543 = vld [vmem:[%s4 + $0xb0] sm:$0xff]
    %v544 = vld [vmem:[%s4 + $0xb8] sm:$0xff]
    %v545 = vld [vmem:[%s4 + $0xc0] sm:$0xff]
    %v546 = vld [vmem:[%s4 + $0xc8] sm:$0xff]
    %v547 = vld [vmem:[%s4 + $0xd0] sm:$0xff]
    %v548 = vld [vmem:[%s4 + $0xd8] sm:$0xff]
    %v549 = vld [vmem:[%s4 + $0xe0] sm:$0xff]
    %v550 = vld [vmem:[%s4 + $0xe8] sm:$0xff]
    %v551 = vld [vmem:[%s4 + $0xf0] sm:$0xff]
    %v552 = vld [vmem:[%s4 + $0xf8] sm:$0xff]
    %v553 = vld [vmem:[%s4 + $0x100] sm:$0xff]
    %v554 = vld [vmem:[%s4 + $0x108] sm:$0xff]
    %v555 = vld [vmem:[%s4 + $0x110] sm:$0xff]
    %v556 = vld [vmem:[%s4 + $0x118] sm:$0xff]
    %v557 = vld [vmem:[%s4 + $0x120] sm:$0xff]
    %v558 = vld [vmem:[%s4 + $0x128] sm:$0xff]
    %v559 = vld [vmem:[%s4 + $0x130] sm:$0xff]
    %v560 = vld [vmem:[%s4 + $0x138] sm:$0xff]
    %v561 = vld [vmem:[%s4 + $0x140] sm:$0xff]
    %v562 = vld [vmem:[%s4 + $0x148] sm:$0xff]
    %v563 = vld [vmem:[%s4 + $0x150] sm:$0xff]
    %v564 = vld [vmem:[%s4 + $0x158] sm:$0xff]
    %v565 = vld [vmem:[%s4 + $0x160] sm:$0xff]
    %v566 = vld [vmem:[%s4 + $0x168] sm:$0xff]
    %v567 = vld [vmem:[%s4 + $0x170] sm:$0xff]
    %v568 = vld [vmem:[%s4 + $0x178] sm:$0xff]
    %v569 = vld [vmem:[%s4 + $0x180] sm:$0xff]
    %v570 = vld [vmem:[%s4 + $0x188] sm:$0xff]
    %v571 = vld [vmem:[%s4 + $0x190] sm:$0xff]
    %v572 = vld [vmem:[%s4 + $0x198] sm:$0xff]
    %v573 = vld [vmem:[%s4 + $0x1a0] sm:$0xff]
    %v574 = vld [vmem:[%s4 + $0x1a8] sm:$0xff]
    %v575 = vld [vmem:[%s4 + $0x1b0] sm:$0xff]
    %v576 = vld [vmem:[%s4 + $0x1b8] sm:$0xff]
    %v577 = vld [vmem:[%s4 + $0x1c0] sm:$0xff]
    %v578 = vld [vmem:[%s4 + $0x1c8] sm:$0xff]
    %v579 = vld [vmem:[%s4 + $0x1d0] sm:$0xff]
    %v580 = vld [vmem:[%s4 + $0x1d8] sm:$0xff]
    %v581 = vld [vmem:[%s4 + $0x1e0] sm:$0xff]
    %v582 = vld [vmem:[%s4 + $0x1e8] sm:$0xff]
    %v583 = vld [vmem:[%s4 + $0x1f0] sm:$0xff]
    %v584 = vld [vmem:[%s4 + $0x1f8] sm:$0xff]
    %586 = vset.pattern.permute.xlu0 0
    %587 = vperm.xlu0 %586, %v521
    %v588 = vpop.permute.xlu0 %587
    %591 = vset.pattern.permute.xlu0 0
    %592 = vperm.xlu0 %591, %v522
    %v593 = vpop.permute.xlu0 %592
    %596 = vset.pattern.permute.xlu0 0
    %597 = vperm.xlu0 %596, %v523
    %v598 = vpop.permute.xlu0 %597
    %601 = vset.pattern.permute.xlu0 0
    %602 = vperm.xlu0 %601, %v524
    %v603 = vpop.permute.xlu0 %602
    %606 = vset.pattern.permute.xlu0 0
    %607 = vperm.xlu0 %606, %v525
    %v608 = vpop.permute.xlu0 %607
    %611 = vset.pattern.permute.xlu0 0
    %612 = vperm.xlu0 %611, %v526
    %v613 = vpop.permute.xlu0 %612
    %616 = vset.pattern.permute.xlu0 0
    %617 = vperm.xlu0 %616, %v527
    %v618 = vpop.permute.xlu0 %617
    %621 = vset.pattern.permute.xlu0 0
    %622 = vperm.xlu0 %621, %v528
    %v623 = vpop.permute.xlu0 %622
    %626 = vset.pattern.permute.xlu0 0
    %627 = vperm.xlu0 %626, %v529
    %v628 = vpop.permute.xlu0 %627
    %631 = vset.pattern.permute.xlu0 0
    %632 = vperm.xlu0 %631, %v530
    %v633 = vpop.permute.xlu0 %632
    %636 = vset.pattern.permute.xlu0 0
    %637 = vperm.xlu0 %636, %v531
    %v638 = vpop.permute.xlu0 %637
    %641 = vset.pattern.permute.xlu0 0
    %642 = vperm.xlu0 %641, %v532
    %v643 = vpop.permute.xlu0 %642
    %646 = vset.pattern.permute.xlu0 0
    %647 = vperm.xlu0 %646, %v533
    %v648 = vpop.permute.xlu0 %647
    %651 = vset.pattern.permute.xlu0 0
    %652 = vperm.xlu0 %651, %v534
    %v653 = vpop.permute.xlu0 %652
    %656 = vset.pattern.permute.xlu0 0
    %657 = vperm.xlu0 %656, %v535
    %v658 = vpop.permute.xlu0 %657
    %661 = vset.pattern.permute.xlu0 0
    %662 = vperm.xlu0 %661, %v536
    %v663 = vpop.permute.xlu0 %662
    %666 = vset.pattern.permute.xlu0 0
    %667 = vperm.xlu0 %666, %v537
    %v668 = vpop.permute.xlu0 %667
    %671 = vset.pattern.permute.xlu0 0
    %672 = vperm.xlu0 %671, %v538
    %v673 = vpop.permute.xlu0 %672
    %676 = vset.pattern.permute.xlu0 0
    %677 = vperm.xlu0 %676, %v539
    %v678 = vpop.permute.xlu0 %677
    %681 = vset.pattern.permute.xlu0 0
    %682 = vperm.xlu0 %681, %v540
    %v683 = vpop.permute.xlu0 %682
    %686 = vset.pattern.permute.xlu0 0
    %687 = vperm.xlu0 %686, %v541
    %v688 = vpop.permute.xlu0 %687
    %691 = vset.pattern.permute.xlu0 0
    %692 = vperm.xlu0 %691, %v542
    %v693 = vpop.permute.xlu0 %692
    %696 = vset.pattern.permute.xlu0 0
    %697 = vperm.xlu0 %696, %v543
    %v698 = vpop.permute.xlu0 %697
    %701 = vset.pattern.permute.xlu0 0
    %702 = vperm.xlu0 %701, %v544
    %v703 = vpop.permute.xlu0 %702
    %706 = vset.pattern.permute.xlu0 0
    %707 = vperm.xlu0 %706, %v545
    %v708 = vpop.permute.xlu0 %707
    %711 = vset.pattern.permute.xlu0 0
    %712 = vperm.xlu0 %711, %v546
    %v713 = vpop.permute.xlu0 %712
    %716 = vset.pattern.permute.xlu0 0
    %717 = vperm.xlu0 %716, %v547
    %v718 = vpop.permute.xlu0 %717
    %721 = vset.pattern.permute.xlu0 0
    %722 = vperm.xlu0 %721, %v548
    %v723 = vpop.permute.xlu0 %722
    %726 = vset.pattern.permute.xlu0 0
    %727 = vperm.xlu0 %726, %v549
    %v728 = vpop.permute.xlu0 %727
    %731 = vset.pattern.permute.xlu0 0
    %732 = vperm.xlu0 %731, %v550
    %v733 = vpop.permute.xlu0 %732
    %736 = vset.pattern.permute.xlu0 0
    %737 = vperm.xlu0 %736, %v551
    %v738 = vpop.permute.xlu0 %737
    %741 = vset.pattern.permute.xlu0 0
    %742 = vperm.xlu0 %741, %v552
    %v743 = vpop.permute.xlu0 %742
    %746 = vset.pattern.permute.xlu0 0
    %747 = vperm.xlu0 %746, %v553
    %v748 = vpop.permute.xlu0 %747
    %751 = vset.pattern.permute.xlu0 0
    %752 = vperm.xlu0 %751, %v554
    %v753 = vpop.permute.xlu0 %752
    %756 = vset.pattern.permute.xlu0 0
    %757 = vperm.xlu0 %756, %v555
    %v758 = vpop.permute.xlu0 %757
    %761 = vset.pattern.permute.xlu0 0
    %762 = vperm.xlu0 %761, %v556
    %v763 = vpop.permute.xlu0 %762
    %766 = vset.pattern.permute.xlu0 0
    %767 = vperm.xlu0 %766, %v557
    %v768 = vpop.permute.xlu0 %767
    %771 = vset.pattern.permute.xlu0 0
    %772 = vperm.xlu0 %771, %v558
    %v773 = vpop.permute.xlu0 %772
    %776 = vset.pattern.permute.xlu0 0
    %777 = vperm.xlu0 %776, %v559
    %v778 = vpop.permute.xlu0 %777
    %781 = vset.pattern.permute.xlu0 0
    %782 = vperm.xlu0 %781, %v560
    %v783 = vpop.permute.xlu0 %782
    %786 = vset.pattern.permute.xlu0 0
    %787 = vperm.xlu0 %786, %v561
    %v788 = vpop.permute.xlu0 %787
    %791 = vset.pattern.permute.xlu0 0
    %792 = vperm.xlu0 %791, %v562
    %v793 = vpop.permute.xlu0 %792
    %796 = vset.pattern.permute.xlu0 0
    %797 = vperm.xlu0 %796, %v563
    %v798 = vpop.permute.xlu0 %797
    %801 = vset.pattern.permute.xlu0 0
    %802 = vperm.xlu0 %801, %v564
    %v803 = vpop.permute.xlu0 %802
    %806 = vset.pattern.permute.xlu0 0
    %807 = vperm.xlu0 %806, %v565
    %v808 = vpop.permute.xlu0 %807
    %811 = vset.pattern.permute.xlu0 0
    %812 = vperm.xlu0 %811, %v566
    %v813 = vpop.permute.xlu0 %812
    %816 = vset.pattern.permute.xlu0 0
    %817 = vperm.xlu0 %816, %v567
    %v818 = vpop.permute.xlu0 %817
    %821 = vset.pattern.permute.xlu0 0
    %822 = vperm.xlu0 %821, %v568
    %v823 = vpop.permute.xlu0 %822
    %826 = vset.pattern.permute.xlu0 0
    %827 = vperm.xlu0 %826, %v569
    %v828 = vpop.permute.xlu0 %827
    %831 = vset.pattern.permute.xlu0 0
    %832 = vperm.xlu0 %831, %v570
    %v833 = vpop.permute.xlu0 %832
    %836 = vset.pattern.permute.xlu0 0
    %837 = vperm.xlu0 %836, %v571
    %v838 = vpop.permute.xlu0 %837
    %841 = vset.pattern.permute.xlu0 0
    %842 = vperm.xlu0 %841, %v572
    %v843 = vpop.permute.xlu0 %842
    %846 = vset.pattern.permute.xlu0 0
    %847 = vperm.xlu0 %846, %v573
    %v848 = vpop.permute.xlu0 %847
    %851 = vset.pattern.permute.xlu0 0
    %852 = vperm.xlu0 %851, %v574
    %v853 = vpop.permute.xlu0 %852
    %856 = vset.pattern.permute.xlu0 0
    %857 = vperm.xlu0 %856, %v575
    %v858 = vpop.permute.xlu0 %857
    %861 = vset.pattern.permute.xlu0 0
    %862 = vperm.xlu0 %861, %v576
    %v863 = vpop.permute.xlu0 %862
    %866 = vset.pattern.permute.xlu0 0
    %867 = vperm.xlu0 %866, %v577
    %v868 = vpop.permute.xlu0 %867
    %871 = vset.pattern.permute.xlu0 0
    %872 = vperm.xlu0 %871, %v578
    %v873 = vpop.permute.xlu0 %872
    %876 = vset.pattern.permute.xlu0 0
    %877 = vperm.xlu0 %876, %v579
    %v878 = vpop.permute.xlu0 %877
    %881 = vset.pattern.permute.xlu0 0
    %882 = vperm.xlu0 %881, %v580
    %v883 = vpop.permute.xlu0 %882
    %886 = vset.pattern.permute.xlu0 0
    %887 = vperm.xlu0 %886, %v581
    %v888 = vpop.permute.xlu0 %887
    %891 = vset.pattern.permute.xlu0 0
    %892 = vperm.xlu0 %891, %v582
    %v893 = vpop.permute.xlu0 %892
    %896 = vset.pattern.permute.xlu0 0
    %897 = vperm.xlu0 %896, %v583
    %v898 = vpop.permute.xlu0 %897
    %901 = vset.pattern.permute.xlu0 0
    %902 = vperm.xlu0 %901, %v584
    %v903 = vpop.permute.xlu0 %902
    %vm905 = vcmask 130048
    %v907 = vsel %vm905, %v457, 0
    %v910 = vsel %vm905, %v458, 0
    %v913 = vsel %vm905, %v459, 0
    %v916 = vsel %vm905, %v460, 0
    %v919 = vsel %vm905, %v461, 0
    %v922 = vsel %vm905, %v462, 0
    %v925 = vsel %vm905, %v463, 0
    %v928 = vsel %vm905, %v464, 0
    %v931 = vsel %vm905, %v465, 0
    %v934 = vsel %vm905, %v466, 0
    %v937 = vsel %vm905, %v467, 0
    %v940 = vsel %vm905, %v468, 0
    %v943 = vsel %vm905, %v469, 0
    %v946 = vsel %vm905, %v470, 0
    %v949 = vsel %vm905, %v471, 0
    %v952 = vsel %vm905, %v472, 0
    %v955 = vsel %vm905, %v473, 0
    %v958 = vsel %vm905, %v474, 0
    %v961 = vsel %vm905, %v475, 0
    %v964 = vsel %vm905, %v476, 0
    %v967 = vsel %vm905, %v477, 0
    %v970 = vsel %vm905, %v478, 0
    %v973 = vsel %vm905, %v479, 0
    %v976 = vsel %vm905, %v480, 0
    %v979 = vsel %vm905, %v481, 0
    %v982 = vsel %vm905, %v482, 0
    %v985 = vsel %vm905, %v483, 0
    %v988 = vsel %vm905, %v484, 0
    %v991 = vsel %vm905, %v485, 0
    %v994 = vsel %vm905, %v486, 0
    %v997 = vsel %vm905, %v487, 0
    %v1000 = vsel %vm905, %v488, 0
    %v1003 = vsel %vm905, %v489, 0
    %v1006 = vsel %vm905, %v490, 0
    %v1009 = vsel %vm905, %v491, 0
    %v1012 = vsel %vm905, %v492, 0
    %v1015 = vsel %vm905, %v493, 0
    %v1018 = vsel %vm905, %v494, 0
    %v1021 = vsel %vm905, %v495, 0
    %v1024 = vsel %vm905, %v496, 0
    %v1027 = vsel %vm905, %v497, 0
    %v1030 = vsel %vm905, %v498, 0
    %v1033 = vsel %vm905, %v499, 0
    %v1036 = vsel %vm905, %v500, 0
    %v1039 = vsel %vm905, %v501, 0
    %v1042 = vsel %vm905, %v502, 0
    %v1045 = vsel %vm905, %v503, 0
    %v1048 = vsel %vm905, %v504, 0
    %v1051 = vsel %vm905, %v505, 0
    %v1054 = vsel %vm905, %v506, 0
    %v1057 = vsel %vm905, %v507, 0
    %v1060 = vsel %vm905, %v508, 0
    %v1063 = vsel %vm905, %v509, 0
    %v1066 = vsel %vm905, %v510, 0
    %v1069 = vsel %vm905, %v511, 0
    %v1072 = vsel %vm905, %v512, 0
    %v1075 = vsel %vm905, %v513, 0
    %v1078 = vsel %vm905, %v514, 0
    %v1081 = vsel %vm905, %v515, 0
    %v1084 = vsel %vm905, %v516, 0
    %v1087 = vsel %vm905, %v517, 0
    %v1090 = vsel %vm905, %v518, 0
    %v1093 = vsel %vm905, %v519, 0
    %v1096 = vsel %vm905, %v520, 0
    %1098 = vmatprep.subr.mxu0 0.0
    %1099 = vmatpush1.msra.mxu0 %v455
    %1100 = vmatprep.subr.mxu0 0.0
    %1101 = vmatpush1.msra.mxu0 %v456
    %1102 = vmatprep.subr.mxu0 0.0
    %1103 = vmatpush1.msra.mxu0 0.0
    %1104 = vmatprep.subr.mxu0 0.0
    %1105 = vmatpush1.msra.mxu0 0.0
    %1106 = vmatprep.subr.mxu0 0.0
    %1107 = vmatpush1.msra.mxu0 0.0
    %1108 = vmatprep.subr.mxu0 0.0
    %1109 = vmatpush1.msra.mxu0 0.0
    %1110 = vmatprep.subr.mxu0 0.0
    %1111 = vmatpush1.msra.mxu0 0.0
    %1112 = vmatprep.subr.mxu0 0.0
    %1113 = vmatpush1.msra.mxu0 0.0
    %1114 = vmatprep.subr.mxu0 0.0
    %1115 = vmatpush1.msra.mxu0 0.0
    %1116 = vmatprep.subr.mxu0 0.0
    %1117 = vmatpush1.msra.mxu0 0.0
    %1118 = vmatprep.subr.mxu0 0.0
    %1119 = vmatpush1.msra.mxu0 0.0
    %1120 = vmatprep.subr.mxu0 0.0
    %1121 = vmatpush1.msra.mxu0 0.0
    %1122 = vmatprep.subr.mxu0 0.0
    %1123 = vmatpush1.msra.mxu0 0.0
    %1124 = vmatprep.subr.mxu0 0.0
    %1125 = vmatpush1.msra.mxu0 0.0
    %1126 = vmatprep.subr.mxu0 0.0
    %1127 = vmatpush1.msra.mxu0 0.0
    %1128 = vmatprep.subr.mxu0 0.0
    %1129 = vmatpush1.msra.mxu0 0.0
    %1130 = vmatprep.subr.mxu0 0.0
    %1131 = vmatpush1.msra.mxu0 0.0
    %1132 = vmatprep.subr.mxu0 0.0
    %1133 = vmatpush1.msra.mxu0 0.0
    %1134 = vmatprep.subr.mxu0 0.0
    %1135 = vmatpush1.msra.mxu0 0.0
    %1136 = vmatprep.subr.mxu0 0.0
    %1137 = vmatpush1.msra.mxu0 0.0
    %1138 = vmatprep.subr.mxu0 0.0
    %1139 = vmatpush1.msra.mxu0 0.0
    %1140 = vmatprep.subr.mxu0 0.0
    %1141 = vmatpush1.msra.mxu0 0.0
    %1142 = vmatprep.subr.mxu0 0.0
    %1143 = vmatpush1.msra.mxu0 0.0
    %1144 = vmatprep.subr.mxu0 0.0
    %1145 = vmatpush1.msra.mxu0 0.0
    %1146 = vmatprep.subr.mxu0 0.0
    %1147 = vmatpush1.msra.mxu0 0.0
    %1148 = vmatprep.subr.mxu0 0.0
    %1149 = vmatpush1.msra.mxu0 0.0
    %1150 = vmatprep.subr.mxu0 0.0
    %1151 = vmatpush1.msra.mxu0 0.0
    %1152 = vmatprep.subr.mxu0 0.0
    %1153 = vmatpush1.msra.mxu0 0.0
    %1154 = vmatprep.subr.mxu0 0.0
    %1155 = vmatpush1.msra.mxu0 0.0
    %1156 = vmatprep.subr.mxu0 0.0
    %1157 = vmatpush1.msra.mxu0 0.0
    %1158 = vmatprep.subr.mxu0 0.0
    %1159 = vmatpush1.msra.mxu0 0.0
    %1160 = vmatprep.subr.mxu0 0.0
    %1161 = vmatpush1.msra.mxu0 0.0
    %1162 = vmatprep.mubr.f32.mxu0 0.0
    %1163 = vmatmul.mubr.f32.gmra.mrb[0].mxu0 %v907
    %v1164 = vpop.f32.mrb[0].mxu0
    %v1165 = vadd.f32 %v588, %v1164
    %v1166 = vpop.f32.mrb[0].mxu0
    %1167 = vmatprep.mubr.f32.mxu0 0.0
    %1168 = vmatmul.mubr.f32.gmra.mrb[0].mxu0 %v910
    %v1169 = vpop.f32.mrb[0].mxu0
    %v1170 = vadd.f32 %v593, %v1169
    %v1171 = vpop.f32.mrb[0].mxu0
    %1172 = vmatprep.mubr.f32.mxu0 0.0
    %1173 = vmatmul.mubr.f32.gmra.mrb[0].mxu0 %v913
    %v1174 = vpop.f32.mrb[0].mxu0
    %v1175 = vadd.f32 %v598, %v1174
    %v1176 = vpop.f32.mrb[0].mxu0
    %1177 = vmatprep.mubr.f32.mxu0 0.0
    %1178 = vmatmul.mubr.f32.gmra.mrb[0].mxu0 %v916
    %v1179 = vpop.f32.mrb[0].mxu0
    %v1180 = vadd.f32 %v603, %v1179
    %v1181 = vpop.f32.mrb[0].mxu0
    %1182 = vmatprep.mubr.f32.mxu0 0.0
    %1183 = vmatmul.mubr.f32.gmra.mrb[0].mxu0 %v919
    %v1184 = vpop.f32.mrb[0].mxu0
    %v1185 = vadd.f32 %v608, %v1184
    %v1186 = vpop.f32.mrb[0].mxu0
    %1187 = vmatprep.mubr.f32.mxu0 0.0
    %1188 = vmatmul.mubr.f32.gmra.mrb[0].mxu0 %v922
    %v1189 = vpop.f32.mrb[0].mxu0
    %v1190 = vadd.f32 %v613, %v1189
    %v1191 = vpop.f32.mrb[0].mxu0
    %1192 = vmatprep.mubr.f32.mxu0 0.0
    %1193 = vmatmul.mubr.f32.gmra.mrb[0].mxu0 %v925
    %v1194 = vpop.f32.mrb[0].mxu0
    %v1195 = vadd.f32 %v618, %v1194
    %v1196 = vpop.f32.mrb[0].mxu0
    %1197 = vmatprep.mubr.f32.mxu0 0.0
    %1198 = vmatmul.mubr.f32.gmra.mrb[0].mxu0 %v928
    %v1199 = vpop.f32.mrb[0].mxu0
    %v1200 = vadd.f32 %v623, %v1199
    %v1201 = vpop.f32.mrb[0].mxu0
    %1202 = vmatprep.mubr.f32.mxu0 0.0
    %1203 = vmatmul.mubr.f32.gmra.mrb[0].mxu0 %v931
    %v1204 = vpop.f32.mrb[0].mxu0
    %v1205 = vadd.f32 %v628, %v1204
    %v1206 = vpop.f32.mrb[0].mxu0
    %1207 = vmatprep.mubr.f32.mxu0 0.0
    %1208 = vmatmul.mubr.f32.gmra.mrb[0].mxu0 %v934
    %v1209 = vpop.f32.mrb[0].mxu0
    %v1210 = vadd.f32 %v633, %v1209
    %v1211 = vpop.f32.mrb[0].mxu0
    %1212 = vmatprep.mubr.f32.mxu0 0.0
    %1213 = vmatmul.mubr.f32.gmra.mrb[0].mxu0 %v937
    %v1214 = vpop.f32.mrb[0].mxu0
    %v1215 = vadd.f32 %v638, %v1214
    %v1216 = vpop.f32.mrb[0].mxu0
    %1217 = vmatprep.mubr.f32.mxu0 0.0
    %1218 = vmatmul.mubr.f32.gmra.mrb[0].mxu0 %v940
    %v1219 = vpop.f32.mrb[0].mxu0
    %v1220 = vadd.f32 %v643, %v1219
    %v1221 = vpop.f32.mrb[0].mxu0
    %1222 = vmatprep.mubr.f32.mxu0 0.0
    %1223 = vmatmul.mubr.f32.gmra.mrb[0].mxu0 %v943
    %v1224 = vpop.f32.mrb[0].mxu0
    %v1225 = vadd.f32 %v648, %v1224
    %v1226 = vpop.f32.mrb[0].mxu0
    %1227 = vmatprep.mubr.f32.mxu0 0.0
    %1228 = vmatmul.mubr.f32.gmra.mrb[0].mxu0 %v946
    %v1229 = vpop.f32.mrb[0].mxu0
    %v1230 = vadd.f32 %v653, %v1229
    %v1231 = vpop.f32.mrb[0].mxu0
    %1232 = vmatprep.mubr.f32.mxu0 0.0
    %1233 = vmatmul.mubr.f32.gmra.mrb[0].mxu0 %v949
    %v1234 = vpop.f32.mrb[0].mxu0
    %v1235 = vadd.f32 %v658, %v1234
    %v1236 = vpop.f32.mrb[0].mxu0
    %1237 = vmatprep.mubr.f32.mxu0 0.0
    %1238 = vmatmul.mubr.f32.gmra.mrb[0].mxu0 %v952
    %v1239 = vpop.f32.mrb[0].mxu0
    %v1240 = vadd.f32 %v663, %v1239
    %v1241 = vpop.f32.mrb[0].mxu0
    %1242 = vmatprep.mubr.f32.mxu0 0.0
    %1243 = vmatmul.mubr.f32.gmra.mrb[0].mxu0 %v955
    %v1244 = vpop.f32.mrb[0].mxu0
    %v1245 = vadd.f32 %v668, %v1244
    %v1246 = vpop.f32.mrb[0].mxu0
    %1247 = vmatprep.mubr.f32.mxu0 0.0
    %1248 = vmatmul.mubr.f32.gmra.mrb[0].mxu0 %v958
    %v1249 = vpop.f32.mrb[0].mxu0
    %v1250 = vadd.f32 %v673, %v1249
    %v1251 = vpop.f32.mrb[0].mxu0
    %1252 = vmatprep.mubr.f32.mxu0 0.0
    %1253 = vmatmul.mubr.f32.gmra.mrb[0].mxu0 %v961
    %v1254 = vpop.f32.mrb[0].mxu0
    %v1255 = vadd.f32 %v678, %v1254
    %v1256 = vpop.f32.mrb[0].mxu0
    %1257 = vmatprep.mubr.f32.mxu0 0.0
    %1258 = vmatmul.mubr.f32.gmra.mrb[0].mxu0 %v964
    %v1259 = vpop.f32.mrb[0].mxu0
    %v1260 = vadd.f32 %v683, %v1259
    %v1261 = vpop.f32.mrb[0].mxu0
    %1262 = vmatprep.mubr.f32.mxu0 0.0
    %1263 = vmatmul.mubr.f32.gmra.mrb[0].mxu0 %v967
    %v1264 = vpop.f32.mrb[0].mxu0
    %v1265 = vadd.f32 %v688, %v1264
    %v1266 = vpop.f32.mrb[0].mxu0
    %1267 = vmatprep.mubr.f32.mxu0 0.0
    %1268 = vmatmul.mubr.f32.gmra.mrb[0].mxu0 %v970
    %v1269 = vpop.f32.mrb[0].mxu0
    %v1270 = vadd.f32 %v693, %v1269
    %v1271 = vpop.f32.mrb[0].mxu0
    %1272 = vmatprep.mubr.f32.mxu0 0.0
    %1273 = vmatmul.mubr.f32.gmra.mrb[0].mxu0 %v973
    %v1274 = vpop.f32.mrb[0].mxu0
    %v1275 = vadd.f32 %v698, %v1274
    %v1276 = vpop.f32.mrb[0].mxu0
    %1277 = vmatprep.mubr.f32.mxu0 0.0
    %1278 = vmatmul.mubr.f32.gmra.mrb[0].mxu0 %v976
    %v1279 = vpop.f32.mrb[0].mxu0
    %v1280 = vadd.f32 %v703, %v1279
    %v1281 = vpop.f32.mrb[0].mxu0
    %1282 = vmatprep.mubr.f32.mxu0 0.0
    %1283 = vmatmul.mubr.f32.gmra.mrb[0].mxu0 %v979
    %v1284 = vpop.f32.mrb[0].mxu0
    %v1285 = vadd.f32 %v708, %v1284
    %v1286 = vpop.f32.mrb[0].mxu0
    %1287 = vmatprep.mubr.f32.mxu0 0.0
    %1288 = vmatmul.mubr.f32.gmra.mrb[0].mxu0 %v982
    %v1289 = vpop.f32.mrb[0].mxu0
    %v1290 = vadd.f32 %v713, %v1289
    %v1291 = vpop.f32.mrb[0].mxu0
    %1292 = vmatprep.mubr.f32.mxu0 0.0
    %1293 = vmatmul.mubr.f32.gmra.mrb[0].mxu0 %v985
    %v1294 = vpop.f32.mrb[0].mxu0
    %v1295 = vadd.f32 %v718, %v1294
    %v1296 = vpop.f32.mrb[0].mxu0
    %1297 = vmatprep.mubr.f32.mxu0 0.0
    %1298 = vmatmul.mubr.f32.gmra.mrb[0].mxu0 %v988
    %v1299 = vpop.f32.mrb[0].mxu0
    %v1300 = vadd.f32 %v723, %v1299
    %v1301 = vpop.f32.mrb[0].mxu0
    %1302 = vmatprep.mubr.f32.mxu0 0.0
    %1303 = vmatmul.mubr.f32.gmra.mrb[0].mxu0 %v991
    %v1304 = vpop.f32.mrb[0].mxu0
    %v1305 = vadd.f32 %v728, %v1304
    %v1306 = vpop.f32.mrb[0].mxu0
    %1307 = vmatprep.mubr.f32.mxu0 0.0
    %1308 = vmatmul.mubr.f32.gmra.mrb[0].mxu0 %v994
    %v1309 = vpop.f32.mrb[0].mxu0
    %v1310 = vadd.f32 %v733, %v1309
    %v1311 = vpop.f32.mrb[0].mxu0
    %1312 = vmatprep.mubr.f32.mxu0 0.0
    %1313 = vmatmul.mubr.f32.gmra.mrb[0].mxu0 %v997
    %v1314 = vpop.f32.mrb[0].mxu0
    %v1315 = vadd.f32 %v738, %v1314
    %v1316 = vpop.f32.mrb[0].mxu0
    %1317 = vmatprep.mubr.f32.mxu0 0.0
    %1318 = vmatmul.mubr.f32.gmra.mrb[0].mxu0 %v1000
    %v1319 = vpop.f32.mrb[0].mxu0
    %v1320 = vadd.f32 %v743, %v1319
    %v1321 = vpop.f32.mrb[0].mxu0
    %1322 = vmatprep.mubr.f32.mxu0 0.0
    %1323 = vmatmul.mubr.f32.gmra.mrb[0].mxu0 %v1003
    %v1324 = vpop.f32.mrb[0].mxu0
    %v1325 = vadd.f32 %v748, %v1324
    %v1326 = vpop.f32.mrb[0].mxu0
    %1327 = vmatprep.mubr.f32.mxu0 0.0
    %1328 = vmatmul.mubr.f32.gmra.mrb[0].mxu0 %v1006
    %v1329 = vpop.f32.mrb[0].mxu0
    %v1330 = vadd.f32 %v753, %v1329
    %v1331 = vpop.f32.mrb[0].mxu0
    %1332 = vmatprep.mubr.f32.mxu0 0.0
    %1333 = vmatmul.mubr.f32.gmra.mrb[0].mxu0 %v1009
    %v1334 = vpop.f32.mrb[0].mxu0
    %v1335 = vadd.f32 %v758, %v1334
    %v1336 = vpop.f32.mrb[0].mxu0
    %1337 = vmatprep.mubr.f32.mxu0 0.0
    %1338 = vmatmul.mubr.f32.gmra.mrb[0].mxu0 %v1012
    %v1339 = vpop.f32.mrb[0].mxu0
    %v1340 = vadd.f32 %v763, %v1339
    %v1341 = vpop.f32.mrb[0].mxu0
    %1342 = vmatprep.mubr.f32.mxu0 0.0
    %1343 = vmatmul.mubr.f32.gmra.mrb[0].mxu0 %v1015
    %v1344 = vpop.f32.mrb[0].mxu0
    %v1345 = vadd.f32 %v768, %v1344
    %v1346 = vpop.f32.mrb[0].mxu0
    %1347 = vmatprep.mubr.f32.mxu0 0.0
    %1348 = vmatmul.mubr.f32.gmra.mrb[0].mxu0 %v1018
    %v1349 = vpop.f32.mrb[0].mxu0
    %v1350 = vadd.f32 %v773, %v1349
    %v1351 = vpop.f32.mrb[0].mxu0
    %1352 = vmatprep.mubr.f32.mxu0 0.0
    %1353 = vmatmul.mubr.f32.gmra.mrb[0].mxu0 %v1021
    %v1354 = vpop.f32.mrb[0].mxu0
    %v1355 = vadd.f32 %v778, %v1354
    %v1356 = vpop.f32.mrb[0].mxu0
    %1357 = vmatprep.mubr.f32.mxu0 0.0
    %1358 = vmatmul.mubr.f32.gmra.mrb[0].mxu0 %v1024
    %v1359 = vpop.f32.mrb[0].mxu0
    %v1360 = vadd.f32 %v783, %v1359
    %v1361 = vpop.f32.mrb[0].mxu0
    %1362 = vmatprep.mubr.f32.mxu0 0.0
    %1363 = vmatmul.mubr.f32.gmra.mrb[0].mxu0 %v1027
    %v1364 = vpop.f32.mrb[0].mxu0
    %v1365 = vadd.f32 %v788, %v1364
    %v1366 = vpop.f32.mrb[0].mxu0
    %1367 = vmatprep.mubr.f32.mxu0 0.0
    %1368 = vmatmul.mubr.f32.gmra.mrb[0].mxu0 %v1030
    %v1369 = vpop.f32.mrb[0].mxu0
    %v1370 = vadd.f32 %v793, %v1369
    %v1371 = vpop.f32.mrb[0].mxu0
    %1372 = vmatprep.mubr.f32.mxu0 0.0
    %1373 = vmatmul.mubr.f32.gmra.mrb[0].mxu0 %v1033
    %v1374 = vpop.f32.mrb[0].mxu0
    %v1375 = vadd.f32 %v798, %v1374
    %v1376 = vpop.f32.mrb[0].mxu0
    %1377 = vmatprep.mubr.f32.mxu0 0.0
    %1378 = vmatmul.mubr.f32.gmra.mrb[0].mxu0 %v1036
    %v1379 = vpop.f32.mrb[0].mxu0
    %v1380 = vadd.f32 %v803, %v1379
    %v1381 = vpop.f32.mrb[0].mxu0
    %1382 = vmatprep.mubr.f32.mxu0 0.0
    %1383 = vmatmul.mubr.f32.gmra.mrb[0].mxu0 %v1039
    %v1384 = vpop.f32.mrb[0].mxu0
    %v1385 = vadd.f32 %v808, %v1384
    %v1386 = vpop.f32.mrb[0].mxu0
    %1387 = vmatprep.mubr.f32.mxu0 0.0
    %1388 = vmatmul.mubr.f32.gmra.mrb[0].mxu0 %v1042
    %v1389 = vpop.f32.mrb[0].mxu0
    %v1390 = vadd.f32 %v813, %v1389
    %v1391 = vpop.f32.mrb[0].mxu0
    %1392 = vmatprep.mubr.f32.mxu0 0.0
    %1393 = vmatmul.mubr.f32.gmra.mrb[0].mxu0 %v1045
    %v1394 = vpop.f32.mrb[0].mxu0
    %v1395 = vadd.f32 %v818, %v1394
    %v1396 = vpop.f32.mrb[0].mxu0
    %1397 = vmatprep.mubr.f32.mxu0 0.0
    %1398 = vmatmul.mubr.f32.gmra.mrb[0].mxu0 %v1048
    %v1399 = vpop.f32.mrb[0].mxu0
    %v1400 = vadd.f32 %v823, %v1399
    %v1401 = vpop.f32.mrb[0].mxu0
    %1402 = vmatprep.mubr.f32.mxu0 0.0
    %1403 = vmatmul.mubr.f32.gmra.mrb[0].mxu0 %v1051
    %v1404 = vpop.f32.mrb[0].mxu0
    %v1405 = vadd.f32 %v828, %v1404
    %v1406 = vpop.f32.mrb[0].mxu0
    %1407 = vmatprep.mubr.f32.mxu0 0.0
    %1408 = vmatmul.mubr.f32.gmra.mrb[0].mxu0 %v1054
    %v1409 = vpop.f32.mrb[0].mxu0
    %v1410 = vadd.f32 %v833, %v1409
    %v1411 = vpop.f32.mrb[0].mxu0
    %1412 = vmatprep.mubr.f32.mxu0 0.0
    %1413 = vmatmul.mubr.f32.gmra.mrb[0].mxu0 %v1057
    %v1414 = vpop.f32.mrb[0].mxu0
    %v1415 = vadd.f32 %v838, %v1414
    %v1416 = vpop.f32.mrb[0].mxu0
    %1417 = vmatprep.mubr.f32.mxu0 0.0
    %1418 = vmatmul.mubr.f32.gmra.mrb[0].mxu0 %v1060
    %v1419 = vpop.f32.mrb[0].mxu0
    %v1420 = vadd.f32 %v843, %v1419
    %v1421 = vpop.f32.mrb[0].mxu0
    %1422 = vmatprep.mubr.f32.mxu0 0.0
    %1423 = vmatmul.mubr.f32.gmra.mrb[0].mxu0 %v1063
    %v1424 = vpop.f32.mrb[0].mxu0
    %v1425 = vadd.f32 %v848, %v1424
    %v1426 = vpop.f32.mrb[0].mxu0
    %1427 = vmatprep.mubr.f32.mxu0 0.0
    %1428 = vmatmul.mubr.f32.gmra.mrb[0].mxu0 %v1066
    %v1429 = vpop.f32.mrb[0].mxu0
    %v1430 = vadd.f32 %v853, %v1429
    %v1431 = vpop.f32.mrb[0].mxu0
    %1432 = vmatprep.mubr.f32.mxu0 0.0
    %1433 = vmatmul.mubr.f32.gmra.mrb[0].mxu0 %v1069
    %v1434 = vpop.f32.mrb[0].mxu0
    %v1435 = vadd.f32 %v858, %v1434
    %v1436 = vpop.f32.mrb[0].mxu0
    %1437 = vmatprep.mubr.f32.mxu0 0.0
    %1438 = vmatmul.mubr.f32.gmra.mrb[0].mxu0 %v1072
    %v1439 = vpop.f32.mrb[0].mxu0
    %v1440 = vadd.f32 %v863, %v1439
    %v1441 = vpop.f32.mrb[0].mxu0
    %1442 = vmatprep.mubr.f32.mxu0 0.0
    %1443 = vmatmul.mubr.f32.gmra.mrb[0].mxu0 %v1075
    %v1444 = vpop.f32.mrb[0].mxu0
    %v1445 = vadd.f32 %v868, %v1444
    %v1446 = vpop.f32.mrb[0].mxu0
    %1447 = vmatprep.mubr.f32.mxu0 0.0
    %1448 = vmatmul.mubr.f32.gmra.mrb[0].mxu0 %v1078
    %v1449 = vpop.f32.mrb[0].mxu0
    %v1450 = vadd.f32 %v873, %v1449
    %v1451 = vpop.f32.mrb[0].mxu0
    %1452 = vmatprep.mubr.f32.mxu0 0.0
    %1453 = vmatmul.mubr.f32.gmra.mrb[0].mxu0 %v1081
    %v1454 = vpop.f32.mrb[0].mxu0
    %v1455 = vadd.f32 %v878, %v1454
    %v1456 = vpop.f32.mrb[0].mxu0
    %1457 = vmatprep.mubr.f32.mxu0 0.0
    %1458 = vmatmul.mubr.f32.gmra.mrb[0].mxu0 %v1084
    %v1459 = vpop.f32.mrb[0].mxu0
    %v1460 = vadd.f32 %v883, %v1459
    %v1461 = vpop.f32.mrb[0].mxu0
    %1462 = vmatprep.mubr.f32.mxu0 0.0
    %1463 = vmatmul.mubr.f32.gmra.mrb[0].mxu0 %v1087
    %v1464 = vpop.f32.mrb[0].mxu0
    %v1465 = vadd.f32 %v888, %v1464
    %v1466 = vpop.f32.mrb[0].mxu0
    %1467 = vmatprep.mubr.f32.mxu0 0.0
    %1468 = vmatmul.mubr.f32.gmra.mrb[0].mxu0 %v1090
    %v1469 = vpop.f32.mrb[0].mxu0
    %v1470 = vadd.f32 %v893, %v1469
    %v1471 = vpop.f32.mrb[0].mxu0
    %1472 = vmatprep.mubr.f32.mxu0 0.0
    %1473 = vmatmul.mubr.f32.gmra.mrb[0].mxu0 %v1093
    %v1474 = vpop.f32.mrb[0].mxu0
    %v1475 = vadd.f32 %v898, %v1474
    %v1476 = vpop.f32.mrb[0].mxu0
    %1477 = vmatprep.mubr.f32.mxu0 0.0
    %1478 = vmatmul.mubr.f32.gmra.mrb[0].mxu0 %v1096
    %v1479 = vpop.f32.mrb[0].mxu0
    %v1480 = vadd.f32 %v903, %v1479
    %v1481 = vpop.f32.mrb[0].mxu0
    %1482 = vdwg.mxu0
    %v1483 = vmax.f32 %v1165, 0.0
    %v1484 = vmax.f32 %v1170, 0.0
    %v1485 = vmax.f32 %v1175, 0.0
    %v1486 = vmax.f32 %v1180, 0.0
    %v1487 = vmax.f32 %v1185, 0.0
    %v1488 = vmax.f32 %v1190, 0.0
    %v1489 = vmax.f32 %v1195, 0.0
    %v1490 = vmax.f32 %v1200, 0.0
    %v1491 = vmax.f32 %v1205, 0.0
    %v1492 = vmax.f32 %v1210, 0.0
    %v1493 = vmax.f32 %v1215, 0.0
    %v1494 = vmax.f32 %v1220, 0.0
    %v1495 = vmax.f32 %v1225, 0.0
    %v1496 = vmax.f32 %v1230, 0.0
    %v1497 = vmax.f32 %v1235, 0.0
    %v1498 = vmax.f32 %v1240, 0.0
    %v1499 = vmax.f32 %v1245, 0.0
    %v1500 = vmax.f32 %v1250, 0.0
    %v1501 = vmax.f32 %v1255, 0.0
    %v1502 = vmax.f32 %v1260, 0.0
    %v1503 = vmax.f32 %v1265, 0.0
    %v1504 = vmax.f32 %v1270, 0.0
    %v1505 = vmax.f32 %v1275, 0.0
    %v1506 = vmax.f32 %v1280, 0.0
    %v1507 = vmax.f32 %v1285, 0.0
    %v1508 = vmax.f32 %v1290, 0.0
    %v1509 = vmax.f32 %v1295, 0.0
    %v1510 = vmax.f32 %v1300, 0.0
    %v1511 = vmax.f32 %v1305, 0.0
    %v1512 = vmax.f32 %v1310, 0.0
    %v1513 = vmax.f32 %v1315, 0.0
    %v1514 = vmax.f32 %v1320, 0.0
    %v1515 = vmax.f32 %v1325, 0.0
    %v1516 = vmax.f32 %v1330, 0.0
    %v1517 = vmax.f32 %v1335, 0.0
    %v1518 = vmax.f32 %v1340, 0.0
    %v1519 = vmax.f32 %v1345, 0.0
    %v1520 = vmax.f32 %v1350, 0.0
    %v1521 = vmax.f32 %v1355, 0.0
    %v1522 = vmax.f32 %v1360, 0.0
    %v1523 = vmax.f32 %v1365, 0.0
    %v1524 = vmax.f32 %v1370, 0.0
    %v1525 = vmax.f32 %v1375, 0.0
    %v1526 = vmax.f32 %v1380, 0.0
    %v1527 = vmax.f32 %v1385, 0.0
    %v1528 = vmax.f32 %v1390, 0.0
    %v1529 = vmax.f32 %v1395, 0.0
    %v1530 = vmax.f32 %v1400, 0.0
    %v1531 = vmax.f32 %v1405, 0.0
    %v1532 = vmax.f32 %v1410, 0.0
    %v1533 = vmax.f32 %v1415, 0.0
    %v1534 = vmax.f32 %v1420, 0.0
    %v1535 = vmax.f32 %v1425, 0.0
    %v1536 = vmax.f32 %v1430, 0.0
    %v1537 = vmax.f32 %v1435, 0.0
    %v1538 = vmax.f32 %v1440, 0.0
    %v1539 = vmax.f32 %v1445, 0.0
    %v1540 = vmax.f32 %v1450, 0.0
    %v1541 = vmax.f32 %v1455, 0.0
    %v1542 = vmax.f32 %v1460, 0.0
    %v1543 = vmax.f32 %v1465, 0.0
    %v1544 = vmax.f32 %v1470, 0.0
    %v1545 = vmax.f32 %v1475, 0.0
    %v1546 = vmax.f32 %v1480, 0.0
    %v1547 = vpack.c.bf16 %v1484, %v1483
    %v1548 = vpack.c.bf16 %v1486, %v1485
    %v1549 = vpack.c.bf16 %v1488, %v1487
    %v1550 = vpack.c.bf16 %v1490, %v1489
    %v1551 = vpack.c.bf16 %v1492, %v1491
    %v1552 = vpack.c.bf16 %v1494, %v1493
    %v1553 = vpack.c.bf16 %v1496, %v1495
    %v1554 = vpack.c.bf16 %v1498, %v1497
    %v1555 = vpack.c.bf16 %v1500, %v1499
    %v1556 = vpack.c.bf16 %v1502, %v1501
    %v1557 = vpack.c.bf16 %v1504, %v1503
    %v1558 = vpack.c.bf16 %v1506, %v1505
    %v1559 = vpack.c.bf16 %v1508, %v1507
    %v1560 = vpack.c.bf16 %v1510, %v1509
    %v1561 = vpack.c.bf16 %v1512, %v1511
    %v1562 = vpack.c.bf16 %v1514, %v1513
    %v1563 = vpack.c.bf16 %v1516, %v1515
    %v1564 = vpack.c.bf16 %v1518, %v1517
    %v1565 = vpack.c.bf16 %v1520, %v1519
    %v1566 = vpack.c.bf16 %v1522, %v1521
    %v1567 = vpack.c.bf16 %v1524, %v1523
    %v1568 = vpack.c.bf16 %v1526, %v1525
    %v1569 = vpack.c.bf16 %v1528, %v1527
    %v1570 = vpack.c.bf16 %v1530, %v1529
    %v1571 = vpack.c.bf16 %v1532, %v1531
    %v1572 = vpack.c.bf16 %v1534, %v1533
    %v1573 = vpack.c.bf16 %v1536, %v1535
    %v1574 = vpack.c.bf16 %v1538, %v1537
    %v1575 = vpack.c.bf16 %v1540, %v1539
    %v1576 = vpack.c.bf16 %v1542, %v1541
    %v1577 = vpack.c.bf16 %v1544, %v1543
    %v1578 = vpack.c.bf16 %v1546, %v1545
    %v1579 = vld [vmem:[%s5] sm:$0xff]
    %v1580 = vld [vmem:[%s5 + $0x8] sm:$0xff]
    %v1581 = vld [vmem:[%s5 + $0x10] sm:$0xff]
    %v1582 = vld [vmem:[%s5 + $0x18] sm:$0xff]
    %v1583 = vld [vmem:[%s5 + $0x20] sm:$0xff]
    %v1584 = vld [vmem:[%s5 + $0x28] sm:$0xff]
    %v1585 = vld [vmem:[%s5 + $0x30] sm:$0xff]
    %v1586 = vld [vmem:[%s5 + $0x38] sm:$0xff]
    %v1587 = vld [vmem:[%s5 + $0x40] sm:$0xff]
    %v1588 = vld [vmem:[%s5 + $0x48] sm:$0xff]
    %v1589 = vld [vmem:[%s5 + $0x50] sm:$0xff]
    %v1590 = vld [vmem:[%s5 + $0x58] sm:$0xff]
    %v1591 = vld [vmem:[%s5 + $0x60] sm:$0xff]
    %v1592 = vld [vmem:[%s5 + $0x68] sm:$0xff]
    %v1593 = vld [vmem:[%s5 + $0x70] sm:$0xff]
    %v1594 = vld [vmem:[%s5 + $0x78] sm:$0xff]
    %v1595 = vld [vmem:[%s5 + $0x80] sm:$0xff]
    %v1596 = vld [vmem:[%s5 + $0x88] sm:$0xff]
    %v1597 = vld [vmem:[%s5 + $0x90] sm:$0xff]
    %v1598 = vld [vmem:[%s5 + $0x98] sm:$0xff]
    %v1599 = vld [vmem:[%s5 + $0xa0] sm:$0xff]
    %v1600 = vld [vmem:[%s5 + $0xa8] sm:$0xff]
    %v1601 = vld [vmem:[%s5 + $0xb0] sm:$0xff]
    %v1602 = vld [vmem:[%s5 + $0xb8] sm:$0xff]
    %v1603 = vld [vmem:[%s5 + $0xc0] sm:$0xff]
    %v1604 = vld [vmem:[%s5 + $0xc8] sm:$0xff]
    %v1605 = vld [vmem:[%s5 + $0xd0] sm:$0xff]
    %v1606 = vld [vmem:[%s5 + $0xd8] sm:$0xff]
    %v1607 = vld [vmem:[%s5 + $0xe0] sm:$0xff]
    %v1608 = vld [vmem:[%s5 + $0xe8] sm:$0xff]
    %v1609 = vld [vmem:[%s5 + $0xf0] sm:$0xff]
    %v1610 = vld [vmem:[%s5 + $0xf8] sm:$0xff]
    %v1611 = vld [vmem:[%s5 + $0x100] sm:$0xff]
    %v1612 = vld [vmem:[%s5 + $0x108] sm:$0xff]
    %v1613 = vld [vmem:[%s5 + $0x110] sm:$0xff]
    %v1614 = vld [vmem:[%s5 + $0x118] sm:$0xff]
    %v1615 = vld [vmem:[%s5 + $0x120] sm:$0xff]
    %v1616 = vld [vmem:[%s5 + $0x128] sm:$0xff]
    %v1617 = vld [vmem:[%s5 + $0x130] sm:$0xff]
    %v1618 = vld [vmem:[%s5 + $0x138] sm:$0xff]
    %v1619 = vld [vmem:[%s5 + $0x140] sm:$0xff]
    %v1620 = vld [vmem:[%s5 + $0x148] sm:$0xff]
    %v1621 = vld [vmem:[%s5 + $0x150] sm:$0xff]
    %v1622 = vld [vmem:[%s5 + $0x158] sm:$0xff]
    %v1623 = vld [vmem:[%s5 + $0x160] sm:$0xff]
    %v1624 = vld [vmem:[%s5 + $0x168] sm:$0xff]
    %v1625 = vld [vmem:[%s5 + $0x170] sm:$0xff]
    %v1626 = vld [vmem:[%s5 + $0x178] sm:$0xff]
    %v1627 = vld [vmem:[%s5 + $0x180] sm:$0xff]
    %v1628 = vld [vmem:[%s5 + $0x188] sm:$0xff]
    %v1629 = vld [vmem:[%s5 + $0x190] sm:$0xff]
    %v1630 = vld [vmem:[%s5 + $0x198] sm:$0xff]
    %v1631 = vld [vmem:[%s5 + $0x1a0] sm:$0xff]
    %v1632 = vld [vmem:[%s5 + $0x1a8] sm:$0xff]
    %v1633 = vld [vmem:[%s5 + $0x1b0] sm:$0xff]
    %v1634 = vld [vmem:[%s5 + $0x1b8] sm:$0xff]
    %v1635 = vld [vmem:[%s5 + $0x1c0] sm:$0xff]
    %v1636 = vld [vmem:[%s5 + $0x1c8] sm:$0xff]
    %v1637 = vld [vmem:[%s5 + $0x1d0] sm:$0xff]
    %v1638 = vld [vmem:[%s5 + $0x1d8] sm:$0xff]
    %v1639 = vld [vmem:[%s5 + $0x1e0] sm:$0xff]
    %v1640 = vld [vmem:[%s5 + $0x1e8] sm:$0xff]
    %v1641 = vld [vmem:[%s5 + $0x1f0] sm:$0xff]
    %v1642 = vld [vmem:[%s5 + $0x1f8] sm:$0xff]
    %v1643 = vld [vmem:[%s6] sm:$0xff]
    %v1644 = vld [vmem:[%s6 + $0x8] sm:$0xff]
    %v1645 = vld [vmem:[%s6 + $0x10] sm:$0xff]
    %v1646 = vld [vmem:[%s6 + $0x18] sm:$0xff]
    %v1647 = vld [vmem:[%s6 + $0x20] sm:$0xff]
    %v1648 = vld [vmem:[%s6 + $0x28] sm:$0xff]
    %v1649 = vld [vmem:[%s6 + $0x30] sm:$0xff]
    %v1650 = vld [vmem:[%s6 + $0x38] sm:$0xff]
    %v1651 = vld [vmem:[%s6 + $0x40] sm:$0xff]
    %v1652 = vld [vmem:[%s6 + $0x48] sm:$0xff]
    %v1653 = vld [vmem:[%s6 + $0x50] sm:$0xff]
    %v1654 = vld [vmem:[%s6 + $0x58] sm:$0xff]
    %v1655 = vld [vmem:[%s6 + $0x60] sm:$0xff]
    %v1656 = vld [vmem:[%s6 + $0x68] sm:$0xff]
    %v1657 = vld [vmem:[%s6 + $0x70] sm:$0xff]
    %v1658 = vld [vmem:[%s6 + $0x78] sm:$0xff]
    %v1659 = vld [vmem:[%s6 + $0x80] sm:$0xff]
    %v1660 = vld [vmem:[%s6 + $0x88] sm:$0xff]
    %v1661 = vld [vmem:[%s6 + $0x90] sm:$0xff]
    %v1662 = vld [vmem:[%s6 + $0x98] sm:$0xff]
    %v1663 = vld [vmem:[%s6 + $0xa0] sm:$0xff]
    %v1664 = vld [vmem:[%s6 + $0xa8] sm:$0xff]
    %v1665 = vld [vmem:[%s6 + $0xb0] sm:$0xff]
    %v1666 = vld [vmem:[%s6 + $0xb8] sm:$0xff]
    %v1667 = vld [vmem:[%s6 + $0xc0] sm:$0xff]
    %v1668 = vld [vmem:[%s6 + $0xc8] sm:$0xff]
    %v1669 = vld [vmem:[%s6 + $0xd0] sm:$0xff]
    %v1670 = vld [vmem:[%s6 + $0xd8] sm:$0xff]
    %v1671 = vld [vmem:[%s6 + $0xe0] sm:$0xff]
    %v1672 = vld [vmem:[%s6 + $0xe8] sm:$0xff]
    %v1673 = vld [vmem:[%s6 + $0xf0] sm:$0xff]
    %v1674 = vld [vmem:[%s6 + $0xf8] sm:$0xff]
    %1676 = vset.pattern.permute.xlu0 0
    %1677 = vperm.xlu0 %1676, %v1643
    %v1678 = vpop.permute.xlu0 %1677
    %1681 = vset.pattern.permute.xlu0 0
    %1682 = vperm.xlu0 %1681, %v1644
    %v1683 = vpop.permute.xlu0 %1682
    %1686 = vset.pattern.permute.xlu0 0
    %1687 = vperm.xlu0 %1686, %v1645
    %v1688 = vpop.permute.xlu0 %1687
    %1691 = vset.pattern.permute.xlu0 0
    %1692 = vperm.xlu0 %1691, %v1646
    %v1693 = vpop.permute.xlu0 %1692
    %1696 = vset.pattern.permute.xlu0 0
    %1697 = vperm.xlu0 %1696, %v1647
    %v1698 = vpop.permute.xlu0 %1697
    %1701 = vset.pattern.permute.xlu0 0
    %1702 = vperm.xlu0 %1701, %v1648
    %v1703 = vpop.permute.xlu0 %1702
    %1706 = vset.pattern.permute.xlu0 0
    %1707 = vperm.xlu0 %1706, %v1649
    %v1708 = vpop.permute.xlu0 %1707
    %1711 = vset.pattern.permute.xlu0 0
    %1712 = vperm.xlu0 %1711, %v1650
    %v1713 = vpop.permute.xlu0 %1712
    %1716 = vset.pattern.permute.xlu0 0
    %1717 = vperm.xlu0 %1716, %v1651
    %v1718 = vpop.permute.xlu0 %1717
    %1721 = vset.pattern.permute.xlu0 0
    %1722 = vperm.xlu0 %1721, %v1652
    %v1723 = vpop.permute.xlu0 %1722
    %1726 = vset.pattern.permute.xlu0 0
    %1727 = vperm.xlu0 %1726, %v1653
    %v1728 = vpop.permute.xlu0 %1727
    %1731 = vset.pattern.permute.xlu0 0
    %1732 = vperm.xlu0 %1731, %v1654
    %v1733 = vpop.permute.xlu0 %1732
    %1736 = vset.pattern.permute.xlu0 0
    %1737 = vperm.xlu0 %1736, %v1655
    %v1738 = vpop.permute.xlu0 %1737
    %1741 = vset.pattern.permute.xlu0 0
    %1742 = vperm.xlu0 %1741, %v1656
    %v1743 = vpop.permute.xlu0 %1742
    %1746 = vset.pattern.permute.xlu0 0
    %1747 = vperm.xlu0 %1746, %v1657
    %v1748 = vpop.permute.xlu0 %1747
    %1751 = vset.pattern.permute.xlu0 0
    %1752 = vperm.xlu0 %1751, %v1658
    %v1753 = vpop.permute.xlu0 %1752
    %1756 = vset.pattern.permute.xlu0 0
    %1757 = vperm.xlu0 %1756, %v1659
    %v1758 = vpop.permute.xlu0 %1757
    %1761 = vset.pattern.permute.xlu0 0
    %1762 = vperm.xlu0 %1761, %v1660
    %v1763 = vpop.permute.xlu0 %1762
    %1766 = vset.pattern.permute.xlu0 0
    %1767 = vperm.xlu0 %1766, %v1661
    %v1768 = vpop.permute.xlu0 %1767
    %1771 = vset.pattern.permute.xlu0 0
    %1772 = vperm.xlu0 %1771, %v1662
    %v1773 = vpop.permute.xlu0 %1772
    %1776 = vset.pattern.permute.xlu0 0
    %1777 = vperm.xlu0 %1776, %v1663
    %v1778 = vpop.permute.xlu0 %1777
    %1781 = vset.pattern.permute.xlu0 0
    %1782 = vperm.xlu0 %1781, %v1664
    %v1783 = vpop.permute.xlu0 %1782
    %1786 = vset.pattern.permute.xlu0 0
    %1787 = vperm.xlu0 %1786, %v1665
    %v1788 = vpop.permute.xlu0 %1787
    %1791 = vset.pattern.permute.xlu0 0
    %1792 = vperm.xlu0 %1791, %v1666
    %v1793 = vpop.permute.xlu0 %1792
    %1796 = vset.pattern.permute.xlu0 0
    %1797 = vperm.xlu0 %1796, %v1667
    %v1798 = vpop.permute.xlu0 %1797
    %1801 = vset.pattern.permute.xlu0 0
    %1802 = vperm.xlu0 %1801, %v1668
    %v1803 = vpop.permute.xlu0 %1802
    %1806 = vset.pattern.permute.xlu0 0
    %1807 = vperm.xlu0 %1806, %v1669
    %v1808 = vpop.permute.xlu0 %1807
    %1811 = vset.pattern.permute.xlu0 0
    %1812 = vperm.xlu0 %1811, %v1670
    %v1813 = vpop.permute.xlu0 %1812
    %1816 = vset.pattern.permute.xlu0 0
    %1817 = vperm.xlu0 %1816, %v1671
    %v1818 = vpop.permute.xlu0 %1817
    %1821 = vset.pattern.permute.xlu0 0
    %1822 = vperm.xlu0 %1821, %v1672
    %v1823 = vpop.permute.xlu0 %1822
    %1826 = vset.pattern.permute.xlu0 0
    %1827 = vperm.xlu0 %1826, %v1673
    %v1828 = vpop.permute.xlu0 %1827
    %1831 = vset.pattern.permute.xlu0 0
    %1832 = vperm.xlu0 %1831, %v1674
    %v1833 = vpop.permute.xlu0 %1832
    %v1899 = vunpack.c.l.b16 %v1579
    %v1900 = vunpack.c.h.b16 %v1579
    %v1901 = vunpack.c.l.b16 %v1580
    %v1902 = vunpack.c.h.b16 %v1580
    %v1903 = vunpack.c.l.b16 %v1581
    %v1904 = vunpack.c.h.b16 %v1581
    %v1905 = vunpack.c.l.b16 %v1582
    %v1906 = vunpack.c.h.b16 %v1582
    %v1907 = vunpack.c.l.b16 %v1583
    %v1908 = vunpack.c.h.b16 %v1583
    %v1909 = vunpack.c.l.b16 %v1584
    %v1910 = vunpack.c.h.b16 %v1584
    %v1911 = vunpack.c.l.b16 %v1585
    %v1912 = vunpack.c.h.b16 %v1585
    %v1913 = vunpack.c.l.b16 %v1586
    %v1914 = vunpack.c.h.b16 %v1586
    %v1915 = vunpack.c.l.b16 %v1587
    %v1916 = vunpack.c.h.b16 %v1587
    %v1917 = vunpack.c.l.b16 %v1588
    %v1918 = vunpack.c.h.b16 %v1588
    %v1919 = vunpack.c.l.b16 %v1589
    %v1920 = vunpack.c.h.b16 %v1589
    %v1921 = vunpack.c.l.b16 %v1590
    %v1922 = vunpack.c.h.b16 %v1590
    %v1923 = vunpack.c.l.b16 %v1591
    %v1924 = vunpack.c.h.b16 %v1591
    %v1925 = vunpack.c.l.b16 %v1592
    %v1926 = vunpack.c.h.b16 %v1592
    %v1927 = vunpack.c.l.b16 %v1593
    %v1928 = vunpack.c.h.b16 %v1593
    %v1929 = vunpack.c.l.b16 %v1594
    %v1930 = vunpack.c.h.b16 %v1594
    %v1931 = vunpack.c.l.b16 %v1595
    %v1932 = vunpack.c.h.b16 %v1595
    %v1933 = vunpack.c.l.b16 %v1596
    %v1934 = vunpack.c.h.b16 %v1596
    %v1935 = vunpack.c.l.b16 %v1597
    %v1936 = vunpack.c.h.b16 %v1597
    %v1937 = vunpack.c.l.b16 %v1598
    %v1938 = vunpack.c.h.b16 %v1598
    %v1939 = vunpack.c.l.b16 %v1599
    %v1940 = vunpack.c.h.b16 %v1599
    %v1941 = vunpack.c.l.b16 %v1600
    %v1942 = vunpack.c.h.b16 %v1600
    %v1943 = vunpack.c.l.b16 %v1601
    %v1944 = vunpack.c.h.b16 %v1601
    %v1945 = vunpack.c.l.b16 %v1602
    %v1946 = vunpack.c.h.b16 %v1602
    %v1947 = vunpack.c.l.b16 %v1603
    %v1948 = vunpack.c.h.b16 %v1603
    %v1949 = vunpack.c.l.b16 %v1604
    %v1950 = vunpack.c.h.b16 %v1604
    %v1951 = vunpack.c.l.b16 %v1605
    %v1952 = vunpack.c.h.b16 %v1605
    %v1953 = vunpack.c.l.b16 %v1606
    %v1954 = vunpack.c.h.b16 %v1606
    %v1955 = vunpack.c.l.b16 %v1607
    %v1956 = vunpack.c.h.b16 %v1607
    %v1957 = vunpack.c.l.b16 %v1608
    %v1958 = vunpack.c.h.b16 %v1608
    %v1959 = vunpack.c.l.b16 %v1609
    %v1960 = vunpack.c.h.b16 %v1609
    %v1961 = vunpack.c.l.b16 %v1610
    %v1962 = vunpack.c.h.b16 %v1610
    %v1963 = vunpack.c.l.b16 %v1611
    %v1964 = vunpack.c.h.b16 %v1611
    %v1965 = vunpack.c.l.b16 %v1612
    %v1966 = vunpack.c.h.b16 %v1612
    %v1967 = vunpack.c.l.b16 %v1613
    %v1968 = vunpack.c.h.b16 %v1613
    %v1969 = vunpack.c.l.b16 %v1614
    %v1970 = vunpack.c.h.b16 %v1614
    %v1971 = vunpack.c.l.b16 %v1615
    %v1972 = vunpack.c.h.b16 %v1615
    %v1973 = vunpack.c.l.b16 %v1616
    %v1974 = vunpack.c.h.b16 %v1616
    %v1975 = vunpack.c.l.b16 %v1617
    %v1976 = vunpack.c.h.b16 %v1617
    %v1977 = vunpack.c.l.b16 %v1618
    %v1978 = vunpack.c.h.b16 %v1618
    %v1979 = vunpack.c.l.b16 %v1619
    %v1980 = vunpack.c.h.b16 %v1619
    %v1981 = vunpack.c.l.b16 %v1620
    %v1982 = vunpack.c.h.b16 %v1620
    %v1983 = vunpack.c.l.b16 %v1621
    %v1984 = vunpack.c.h.b16 %v1621
    %v1985 = vunpack.c.l.b16 %v1622
    %v1986 = vunpack.c.h.b16 %v1622
    %v1987 = vunpack.c.l.b16 %v1623
    %v1988 = vunpack.c.h.b16 %v1623
    %v1989 = vunpack.c.l.b16 %v1624
    %v1990 = vunpack.c.h.b16 %v1624
    %v1991 = vunpack.c.l.b16 %v1625
    %v1992 = vunpack.c.h.b16 %v1625
    %v1993 = vunpack.c.l.b16 %v1626
    %v1994 = vunpack.c.h.b16 %v1626
    %v1995 = vunpack.c.l.b16 %v1627
    %v1996 = vunpack.c.h.b16 %v1627
    %v1997 = vunpack.c.l.b16 %v1628
    %v1998 = vunpack.c.h.b16 %v1628
    %v1999 = vunpack.c.l.b16 %v1629
    %v2000 = vunpack.c.h.b16 %v1629
    %v2001 = vunpack.c.l.b16 %v1630
    %v2002 = vunpack.c.h.b16 %v1630
    %v2003 = vunpack.c.l.b16 %v1631
    %v2004 = vunpack.c.h.b16 %v1631
    %v2005 = vunpack.c.l.b16 %v1632
    %v2006 = vunpack.c.h.b16 %v1632
    %v2007 = vunpack.c.l.b16 %v1633
    %v2008 = vunpack.c.h.b16 %v1633
    %v2009 = vunpack.c.l.b16 %v1634
    %v2010 = vunpack.c.h.b16 %v1634
    %v2011 = vunpack.c.l.b16 %v1635
    %v2012 = vunpack.c.h.b16 %v1635
    %v2013 = vunpack.c.l.b16 %v1636
    %v2014 = vunpack.c.h.b16 %v1636
    %v2015 = vunpack.c.l.b16 %v1637
    %v2016 = vunpack.c.h.b16 %v1637
    %v2017 = vunpack.c.l.b16 %v1638
    %v2018 = vunpack.c.h.b16 %v1638
    %v2019 = vunpack.c.l.b16 %v1639
    %v2020 = vunpack.c.h.b16 %v1639
    %v2021 = vunpack.c.l.b16 %v1640
    %v2022 = vunpack.c.h.b16 %v1640
    %v2023 = vunpack.c.l.b16 %v1641
    %v2024 = vunpack.c.h.b16 %v1641
    %v2025 = vunpack.c.l.b16 %v1642
    %v2026 = vunpack.c.h.b16 %v1642
    %v2027 = vpack.c.b16 %v1903, %v1899
    %v2028 = vpack.c.b16 %v1904, %v1900
    %v2029 = vpack.c.b16 %v1905, %v1901
    %v2030 = vpack.c.b16 %v1906, %v1902
    %v2031 = vpack.c.b16 %v1911, %v1907
    %v2032 = vpack.c.b16 %v1912, %v1908
    %v2033 = vpack.c.b16 %v1913, %v1909
    %v2034 = vpack.c.b16 %v1914, %v1910
    %v2035 = vpack.c.b16 %v1919, %v1915
    %v2036 = vpack.c.b16 %v1920, %v1916
    %v2037 = vpack.c.b16 %v1921, %v1917
    %v2038 = vpack.c.b16 %v1922, %v1918
    %v2039 = vpack.c.b16 %v1927, %v1923
    %v2040 = vpack.c.b16 %v1928, %v1924
    %v2041 = vpack.c.b16 %v1929, %v1925
    %v2042 = vpack.c.b16 %v1930, %v1926
    %v2043 = vpack.c.b16 %v1935, %v1931
    %v2044 = vpack.c.b16 %v1936, %v1932
    %v2045 = vpack.c.b16 %v1937, %v1933
    %v2046 = vpack.c.b16 %v1938, %v1934
    %v2047 = vpack.c.b16 %v1943, %v1939
    %v2048 = vpack.c.b16 %v1944, %v1940
    %v2049 = vpack.c.b16 %v1945, %v1941
    %v2050 = vpack.c.b16 %v1946, %v1942
    %v2051 = vpack.c.b16 %v1951, %v1947
    %v2052 = vpack.c.b16 %v1952, %v1948
    %v2053 = vpack.c.b16 %v1953, %v1949
    %v2054 = vpack.c.b16 %v1954, %v1950
    %v2055 = vpack.c.b16 %v1959, %v1955
    %v2056 = vpack.c.b16 %v1960, %v1956
    %v2057 = vpack.c.b16 %v1961, %v1957
    %v2058 = vpack.c.b16 %v1962, %v1958
    %v2059 = vpack.c.b16 %v1967, %v1963
    %v2060 = vpack.c.b16 %v1968, %v1964
    %v2061 = vpack.c.b16 %v1969, %v1965
    %v2062 = vpack.c.b16 %v1970, %v1966
    %v2063 = vpack.c.b16 %v1975, %v1971
    %v2064 = vpack.c.b16 %v1976, %v1972
    %v2065 = vpack.c.b16 %v1977, %v1973
    %v2066 = vpack.c.b16 %v1978, %v1974
    %v2067 = vpack.c.b16 %v1983, %v1979
    %v2068 = vpack.c.b16 %v1984, %v1980
    %v2069 = vpack.c.b16 %v1985, %v1981
    %v2070 = vpack.c.b16 %v1986, %v1982
    %v2071 = vpack.c.b16 %v1991, %v1987
    %v2072 = vpack.c.b16 %v1992, %v1988
    %v2073 = vpack.c.b16 %v1993, %v1989
    %v2074 = vpack.c.b16 %v1994, %v1990
    %v2075 = vpack.c.b16 %v1999, %v1995
    %v2076 = vpack.c.b16 %v2000, %v1996
    %v2077 = vpack.c.b16 %v2001, %v1997
    %v2078 = vpack.c.b16 %v2002, %v1998
    %v2079 = vpack.c.b16 %v2007, %v2003
    %v2080 = vpack.c.b16 %v2008, %v2004
    %v2081 = vpack.c.b16 %v2009, %v2005
    %v2082 = vpack.c.b16 %v2010, %v2006
    %v2083 = vpack.c.b16 %v2015, %v2011
    %v2084 = vpack.c.b16 %v2016, %v2012
    %v2085 = vpack.c.b16 %v2017, %v2013
    %v2086 = vpack.c.b16 %v2018, %v2014
    %v2087 = vpack.c.b16 %v2023, %v2019
    %v2088 = vpack.c.b16 %v2024, %v2020
    %v2089 = vpack.c.b16 %v2025, %v2021
    %v2090 = vpack.c.b16 %v2026, %v2022
    %2155 = vmatprep.subr.bf16.mxu0 0
    %2156 = vmatpush1.bf16.msra.mxu0 %v1547
    %2157 = vmatprep.subr.bf16.mxu0 0
    %2158 = vmatpush1.bf16.msra.mxu0 %v1548
    %2159 = vmatprep.subr.bf16.mxu0 0
    %2160 = vmatpush1.bf16.msra.mxu0 %v1549
    %2161 = vmatprep.subr.bf16.mxu0 0
    %2162 = vmatpush1.bf16.msra.mxu0 %v1550
    %2163 = vmatprep.subr.bf16.mxu0 0
    %2164 = vmatpush1.bf16.msra.mxu0 %v1551
    %2165 = vmatprep.subr.bf16.mxu0 0
    %2166 = vmatpush1.bf16.msra.mxu0 %v1552
    %2167 = vmatprep.subr.bf16.mxu0 0
    %2168 = vmatpush1.bf16.msra.mxu0 %v1553
    %2169 = vmatprep.subr.bf16.mxu0 0
    %2170 = vmatpush1.bf16.msra.mxu0 %v1554
    %2171 = vmatprep.subr.bf16.mxu0 0
    %2172 = vmatpush1.bf16.msra.mxu0 %v1555
    %2173 = vmatprep.subr.bf16.mxu0 0
    %2174 = vmatpush1.bf16.msra.mxu0 %v1556
    %2175 = vmatprep.subr.bf16.mxu0 0
    %2176 = vmatpush1.bf16.msra.mxu0 %v1557
    %2177 = vmatprep.subr.bf16.mxu0 0
    %2178 = vmatpush1.bf16.msra.mxu0 %v1558
    %2179 = vmatprep.subr.bf16.mxu0 0
    %2180 = vmatpush1.bf16.msra.mxu0 %v1559
    %2181 = vmatprep.subr.bf16.mxu0 0
    %2182 = vmatpush1.bf16.msra.mxu0 %v1560
    %2183 = vmatprep.subr.bf16.mxu0 0
    %2184 = vmatpush1.bf16.msra.mxu0 %v1561
    %2185 = vmatprep.subr.bf16.mxu0 0
    %2186 = vmatpush1.bf16.msra.mxu0 %v1562
    %2187 = vmatprep.mubr.bf16.mxu0 %v2028
    %2188 = vmatmul.mubr.bf16.gmra.mrb[0].mxu0 %v2027
    %v2189 = vpop.f32.mrb[0].mxu0
    %v2190 = vadd.f32 %v1678, %v2189
    %v2191 = vpop.f32.mrb[0].mxu0
    %v2192 = vpop.f32.mrb[0].mxu0
    %v2193 = vadd.f32 %v1683, %v2192
    %v2194 = vpop.f32.mrb[0].mxu0
    %2195 = vmatprep.mubr.bf16.mxu0 %v2032
    %2196 = vmatmul.mubr.bf16.gmra.mrb[0].mxu0 %v2031
    %v2197 = vpop.f32.mrb[0].mxu0
    %v2198 = vadd.f32 %v1688, %v2197
    %v2199 = vpop.f32.mrb[0].mxu0
    %v2200 = vpop.f32.mrb[0].mxu0
    %v2201 = vadd.f32 %v1693, %v2200
    %v2202 = vpop.f32.mrb[0].mxu0
    %2203 = vmatprep.mubr.bf16.mxu0 %v2036
    %2204 = vmatmul.mubr.bf16.gmra.mrb[0].mxu0 %v2035
    %v2205 = vpop.f32.mrb[0].mxu0
    %v2206 = vadd.f32 %v1698, %v2205
    %v2207 = vpop.f32.mrb[0].mxu0
    %v2208 = vpop.f32.mrb[0].mxu0
    %v2209 = vadd.f32 %v1703, %v2208
    %v2210 = vpop.f32.mrb[0].mxu0
    %2211 = vmatprep.mubr.bf16.mxu0 %v2040
    %2212 = vmatmul.mubr.bf16.gmra.mrb[0].mxu0 %v2039
    %v2213 = vpop.f32.mrb[0].mxu0
    %v2214 = vadd.f32 %v1708, %v2213
    %v2215 = vpop.f32.mrb[0].mxu0
    %v2216 = vpop.f32.mrb[0].mxu0
    %v2217 = vadd.f32 %v1713, %v2216
    %v2218 = vpop.f32.mrb[0].mxu0
    %2219 = vmatprep.mubr.bf16.mxu0 %v2044
    %2220 = vmatmul.mubr.bf16.gmra.mrb[0].mxu0 %v2043
    %v2221 = vpop.f32.mrb[0].mxu0
    %v2222 = vadd.f32 %v1718, %v2221
    %v2223 = vpop.f32.mrb[0].mxu0
    %v2224 = vpop.f32.mrb[0].mxu0
    %v2225 = vadd.f32 %v1723, %v2224
    %v2226 = vpop.f32.mrb[0].mxu0
    %2227 = vmatprep.mubr.bf16.mxu0 %v2048
    %2228 = vmatmul.mubr.bf16.gmra.mrb[0].mxu0 %v2047
    %v2229 = vpop.f32.mrb[0].mxu0
    %v2230 = vadd.f32 %v1728, %v2229
    %v2231 = vpop.f32.mrb[0].mxu0
    %v2232 = vpop.f32.mrb[0].mxu0
    %v2233 = vadd.f32 %v1733, %v2232
    %v2234 = vpop.f32.mrb[0].mxu0
    %2235 = vmatprep.mubr.bf16.mxu0 %v2052
    %2236 = vmatmul.mubr.bf16.gmra.mrb[0].mxu0 %v2051
    %v2237 = vpop.f32.mrb[0].mxu0
    %v2238 = vadd.f32 %v1738, %v2237
    %v2239 = vpop.f32.mrb[0].mxu0
    %v2240 = vpop.f32.mrb[0].mxu0
    %v2241 = vadd.f32 %v1743, %v2240
    %v2242 = vpop.f32.mrb[0].mxu0
    %2243 = vmatprep.mubr.bf16.mxu0 %v2056
    %2244 = vmatmul.mubr.bf16.gmra.mrb[0].mxu0 %v2055
    %v2245 = vpop.f32.mrb[0].mxu0
    %v2246 = vadd.f32 %v1748, %v2245
    %v2247 = vpop.f32.mrb[0].mxu0
    %v2248 = vpop.f32.mrb[0].mxu0
    %v2249 = vadd.f32 %v1753, %v2248
    %v2250 = vpop.f32.mrb[0].mxu0
    %2251 = vmatprep.mubr.bf16.mxu0 %v2060
    %2252 = vmatmul.mubr.bf16.gmra.mrb[0].mxu0 %v2059
    %v2253 = vpop.f32.mrb[0].mxu0
    %v2254 = vadd.f32 %v1758, %v2253
    %v2255 = vpop.f32.mrb[0].mxu0
    %v2256 = vpop.f32.mrb[0].mxu0
    %v2257 = vadd.f32 %v1763, %v2256
    %v2258 = vpop.f32.mrb[0].mxu0
    %2259 = vmatprep.mubr.bf16.mxu0 %v2064
    %2260 = vmatmul.mubr.bf16.gmra.mrb[0].mxu0 %v2063
    %v2261 = vpop.f32.mrb[0].mxu0
    %v2262 = vadd.f32 %v1768, %v2261
    %v2263 = vpop.f32.mrb[0].mxu0
    %v2264 = vpop.f32.mrb[0].mxu0
    %v2265 = vadd.f32 %v1773, %v2264
    %v2266 = vpop.f32.mrb[0].mxu0
    %2267 = vmatprep.mubr.bf16.mxu0 %v2068
    %2268 = vmatmul.mubr.bf16.gmra.mrb[0].mxu0 %v2067
    %v2269 = vpop.f32.mrb[0].mxu0
    %v2270 = vadd.f32 %v1778, %v2269
    %v2271 = vpop.f32.mrb[0].mxu0
    %v2272 = vpop.f32.mrb[0].mxu0
    %v2273 = vadd.f32 %v1783, %v2272
    %v2274 = vpop.f32.mrb[0].mxu0
    %2275 = vmatprep.mubr.bf16.mxu0 %v2072
    %2276 = vmatmul.mubr.bf16.gmra.mrb[0].mxu0 %v2071
    %v2277 = vpop.f32.mrb[0].mxu0
    %v2278 = vadd.f32 %v1788, %v2277
    %v2279 = vpop.f32.mrb[0].mxu0
    %v2280 = vpop.f32.mrb[0].mxu0
    %v2281 = vadd.f32 %v1793, %v2280
    %v2282 = vpop.f32.mrb[0].mxu0
    %2283 = vmatprep.mubr.bf16.mxu0 %v2076
    %2284 = vmatmul.mubr.bf16.gmra.mrb[0].mxu0 %v2075
    %v2285 = vpop.f32.mrb[0].mxu0
    %v2286 = vadd.f32 %v1798, %v2285
    %v2287 = vpop.f32.mrb[0].mxu0
    %v2288 = vpop.f32.mrb[0].mxu0
    %v2289 = vadd.f32 %v1803, %v2288
    %v2290 = vpop.f32.mrb[0].mxu0
    %2291 = vmatprep.mubr.bf16.mxu0 %v2080
    %2292 = vmatmul.mubr.bf16.gmra.mrb[0].mxu0 %v2079
    %v2293 = vpop.f32.mrb[0].mxu0
    %v2294 = vadd.f32 %v1808, %v2293
    %v2295 = vpop.f32.mrb[0].mxu0
    %v2296 = vpop.f32.mrb[0].mxu0
    %v2297 = vadd.f32 %v1813, %v2296
    %v2298 = vpop.f32.mrb[0].mxu0
    %2299 = vmatprep.mubr.bf16.mxu0 %v2084
    %2300 = vmatmul.mubr.bf16.gmra.mrb[0].mxu0 %v2083
    %v2301 = vpop.f32.mrb[0].mxu0
    %v2302 = vadd.f32 %v1818, %v2301
    %v2303 = vpop.f32.mrb[0].mxu0
    %v2304 = vpop.f32.mrb[0].mxu0
    %v2305 = vadd.f32 %v1823, %v2304
    %v2306 = vpop.f32.mrb[0].mxu0
    %2307 = vmatprep.mubr.bf16.mxu0 %v2088
    %2308 = vmatmul.mubr.bf16.gmra.mrb[0].mxu0 %v2087
    %v2309 = vpop.f32.mrb[0].mxu0
    %v2310 = vadd.f32 %v1828, %v2309
    %v2311 = vpop.f32.mrb[0].mxu0
    %v2312 = vpop.f32.mrb[0].mxu0
    %v2313 = vadd.f32 %v1833, %v2312
    %v2314 = vpop.f32.mrb[0].mxu0
    %2315 = vdwg.mxu0
    %2316 = vmatprep.subr.bf16.mxu0 0
    %2317 = vmatpush1.bf16.msra.mxu0 %v1563
    %2318 = vmatprep.subr.bf16.mxu0 0
    %2319 = vmatpush1.bf16.msra.mxu0 %v1564
    %2320 = vmatprep.subr.bf16.mxu0 0
    %2321 = vmatpush1.bf16.msra.mxu0 %v1565
    %2322 = vmatprep.subr.bf16.mxu0 0
    %2323 = vmatpush1.bf16.msra.mxu0 %v1566
    %2324 = vmatprep.subr.bf16.mxu0 0
    %2325 = vmatpush1.bf16.msra.mxu0 %v1567
    %2326 = vmatprep.subr.bf16.mxu0 0
    %2327 = vmatpush1.bf16.msra.mxu0 %v1568
    %2328 = vmatprep.subr.bf16.mxu0 0
    %2329 = vmatpush1.bf16.msra.mxu0 %v1569
    %2330 = vmatprep.subr.bf16.mxu0 0
    %2331 = vmatpush1.bf16.msra.mxu0 %v1570
    %2332 = vmatprep.subr.bf16.mxu0 0
    %2333 = vmatpush1.bf16.msra.mxu0 %v1571
    %2334 = vmatprep.subr.bf16.mxu0 0
    %2335 = vmatpush1.bf16.msra.mxu0 %v1572
    %2336 = vmatprep.subr.bf16.mxu0 0
    %2337 = vmatpush1.bf16.msra.mxu0 %v1573
    %2338 = vmatprep.subr.bf16.mxu0 0
    %2339 = vmatpush1.bf16.msra.mxu0 %v1574
    %2340 = vmatprep.subr.bf16.mxu0 0
    %2341 = vmatpush1.bf16.msra.mxu0 %v1575
    %2342 = vmatprep.subr.bf16.mxu0 0
    %2343 = vmatpush1.bf16.msra.mxu0 %v1576
    %2344 = vmatprep.subr.bf16.mxu0 0
    %2345 = vmatpush1.bf16.msra.mxu0 %v1577
    %2346 = vmatprep.subr.bf16.mxu0 0
    %2347 = vmatpush1.bf16.msra.mxu0 %v1578
    %2348 = vmatprep.mubr.bf16.mxu0 %v2030
    %2349 = vmatmul.mubr.bf16.gmra.mrb[0].mxu0 %v2029
    %v2350 = vpop.f32.mrb[0].mxu0
    %v2351 = vadd.f32 %v2190, %v2350
    %v2352 = vpop.f32.mrb[0].mxu0
    %v2353 = vpop.f32.mrb[0].mxu0
    %v2354 = vadd.f32 %v2193, %v2353
    %v2355 = vpop.f32.mrb[0].mxu0
    %2356 = vmatprep.mubr.bf16.mxu0 %v2034
    %2357 = vmatmul.mubr.bf16.gmra.mrb[0].mxu0 %v2033
    %v2358 = vpop.f32.mrb[0].mxu0
    %v2359 = vadd.f32 %v2198, %v2358
    %v2360 = vpop.f32.mrb[0].mxu0
    %v2361 = vpop.f32.mrb[0].mxu0
    %v2362 = vadd.f32 %v2201, %v2361
    %v2363 = vpop.f32.mrb[0].mxu0
    %2364 = vmatprep.mubr.bf16.mxu0 %v2038
    %2365 = vmatmul.mubr.bf16.gmra.mrb[0].mxu0 %v2037
    %v2366 = vpop.f32.mrb[0].mxu0
    %v2367 = vadd.f32 %v2206, %v2366
    %v2368 = vpop.f32.mrb[0].mxu0
    %v2369 = vpop.f32.mrb[0].mxu0
    %v2370 = vadd.f32 %v2209, %v2369
    %v2371 = vpop.f32.mrb[0].mxu0
    %2372 = vmatprep.mubr.bf16.mxu0 %v2042
    %2373 = vmatmul.mubr.bf16.gmra.mrb[0].mxu0 %v2041
    %v2374 = vpop.f32.mrb[0].mxu0
    %v2375 = vadd.f32 %v2214, %v2374
    %v2376 = vpop.f32.mrb[0].mxu0
    %v2377 = vpop.f32.mrb[0].mxu0
    %v2378 = vadd.f32 %v2217, %v2377
    %v2379 = vpop.f32.mrb[0].mxu0
    %2380 = vmatprep.mubr.bf16.mxu0 %v2046
    %2381 = vmatmul.mubr.bf16.gmra.mrb[0].mxu0 %v2045
    %v2382 = vpop.f32.mrb[0].mxu0
    %v2383 = vadd.f32 %v2222, %v2382
    %v2384 = vpop.f32.mrb[0].mxu0
    %v2385 = vpop.f32.mrb[0].mxu0
    %v2386 = vadd.f32 %v2225, %v2385
    %v2387 = vpop.f32.mrb[0].mxu0
    %2388 = vmatprep.mubr.bf16.mxu0 %v2050
    %2389 = vmatmul.mubr.bf16.gmra.mrb[0].mxu0 %v2049
    %v2390 = vpop.f32.mrb[0].mxu0
    %v2391 = vadd.f32 %v2230, %v2390
    %v2392 = vpop.f32.mrb[0].mxu0
    %v2393 = vpop.f32.mrb[0].mxu0
    %v2394 = vadd.f32 %v2233, %v2393
    %v2395 = vpop.f32.mrb[0].mxu0
    %2396 = vmatprep.mubr.bf16.mxu0 %v2054
    %2397 = vmatmul.mubr.bf16.gmra.mrb[0].mxu0 %v2053
    %v2398 = vpop.f32.mrb[0].mxu0
    %v2399 = vadd.f32 %v2238, %v2398
    %v2400 = vpop.f32.mrb[0].mxu0
    %v2401 = vpop.f32.mrb[0].mxu0
    %v2402 = vadd.f32 %v2241, %v2401
    %v2403 = vpop.f32.mrb[0].mxu0
    %2404 = vmatprep.mubr.bf16.mxu0 %v2058
    %2405 = vmatmul.mubr.bf16.gmra.mrb[0].mxu0 %v2057
    %v2406 = vpop.f32.mrb[0].mxu0
    %v2407 = vadd.f32 %v2246, %v2406
    %v2408 = vpop.f32.mrb[0].mxu0
    %v2409 = vpop.f32.mrb[0].mxu0
    %v2410 = vadd.f32 %v2249, %v2409
    %v2411 = vpop.f32.mrb[0].mxu0
    %2412 = vmatprep.mubr.bf16.mxu0 %v2062
    %2413 = vmatmul.mubr.bf16.gmra.mrb[0].mxu0 %v2061
    %v2414 = vpop.f32.mrb[0].mxu0
    %v2415 = vadd.f32 %v2254, %v2414
    %v2416 = vpop.f32.mrb[0].mxu0
    %v2417 = vpop.f32.mrb[0].mxu0
    %v2418 = vadd.f32 %v2257, %v2417
    %v2419 = vpop.f32.mrb[0].mxu0
    %2420 = vmatprep.mubr.bf16.mxu0 %v2066
    %2421 = vmatmul.mubr.bf16.gmra.mrb[0].mxu0 %v2065
    %v2422 = vpop.f32.mrb[0].mxu0
    %v2423 = vadd.f32 %v2262, %v2422
    %v2424 = vpop.f32.mrb[0].mxu0
    %v2425 = vpop.f32.mrb[0].mxu0
    %v2426 = vadd.f32 %v2265, %v2425
    %v2427 = vpop.f32.mrb[0].mxu0
    %2428 = vmatprep.mubr.bf16.mxu0 %v2070
    %2429 = vmatmul.mubr.bf16.gmra.mrb[0].mxu0 %v2069
    %v2430 = vpop.f32.mrb[0].mxu0
    %v2431 = vadd.f32 %v2270, %v2430
    %v2432 = vpop.f32.mrb[0].mxu0
    %v2433 = vpop.f32.mrb[0].mxu0
    %v2434 = vadd.f32 %v2273, %v2433
    %v2435 = vpop.f32.mrb[0].mxu0
    %2436 = vmatprep.mubr.bf16.mxu0 %v2074
    %2437 = vmatmul.mubr.bf16.gmra.mrb[0].mxu0 %v2073
    %v2438 = vpop.f32.mrb[0].mxu0
    %v2439 = vadd.f32 %v2278, %v2438
    %v2440 = vpop.f32.mrb[0].mxu0
    %v2441 = vpop.f32.mrb[0].mxu0
    %v2442 = vadd.f32 %v2281, %v2441
    %v2443 = vpop.f32.mrb[0].mxu0
    %2444 = vmatprep.mubr.bf16.mxu0 %v2078
    %2445 = vmatmul.mubr.bf16.gmra.mrb[0].mxu0 %v2077
    %v2446 = vpop.f32.mrb[0].mxu0
    %v2447 = vadd.f32 %v2286, %v2446
    %v2448 = vpop.f32.mrb[0].mxu0
    %v2449 = vpop.f32.mrb[0].mxu0
    %v2450 = vadd.f32 %v2289, %v2449
    %v2451 = vpop.f32.mrb[0].mxu0
    %2452 = vmatprep.mubr.bf16.mxu0 %v2082
    %2453 = vmatmul.mubr.bf16.gmra.mrb[0].mxu0 %v2081
    %v2454 = vpop.f32.mrb[0].mxu0
    %v2455 = vadd.f32 %v2294, %v2454
    %v2456 = vpop.f32.mrb[0].mxu0
    %v2457 = vpop.f32.mrb[0].mxu0
    %v2458 = vadd.f32 %v2297, %v2457
    %v2459 = vpop.f32.mrb[0].mxu0
    %2460 = vmatprep.mubr.bf16.mxu0 %v2086
    %2461 = vmatmul.mubr.bf16.gmra.mrb[0].mxu0 %v2085
    %v2462 = vpop.f32.mrb[0].mxu0
    %v2463 = vadd.f32 %v2302, %v2462
    %v2464 = vpop.f32.mrb[0].mxu0
    %v2465 = vpop.f32.mrb[0].mxu0
    %v2466 = vadd.f32 %v2305, %v2465
    %v2467 = vpop.f32.mrb[0].mxu0
    %2468 = vmatprep.mubr.bf16.mxu0 %v2090
    %2469 = vmatmul.mubr.bf16.gmra.mrb[0].mxu0 %v2089
    %v2470 = vpop.f32.mrb[0].mxu0
    %v2471 = vadd.f32 %v2310, %v2470
    %v2472 = vpop.f32.mrb[0].mxu0
    %v2473 = vpop.f32.mrb[0].mxu0
    %v2474 = vadd.f32 %v2313, %v2473
    %v2475 = vpop.f32.mrb[0].mxu0
    %2476 = vdwg.mxu0
    %v2477 = vmax.f32 %v2351, 0.0
    %v2478 = vmax.f32 %v2354, 0.0
    %v2479 = vmax.f32 %v2359, 0.0
    %v2480 = vmax.f32 %v2362, 0.0
    %v2481 = vmax.f32 %v2367, 0.0
    %v2482 = vmax.f32 %v2370, 0.0
    %v2483 = vmax.f32 %v2375, 0.0
    %v2484 = vmax.f32 %v2378, 0.0
    %v2485 = vmax.f32 %v2383, 0.0
    %v2486 = vmax.f32 %v2386, 0.0
    %v2487 = vmax.f32 %v2391, 0.0
    %v2488 = vmax.f32 %v2394, 0.0
    %v2489 = vmax.f32 %v2399, 0.0
    %v2490 = vmax.f32 %v2402, 0.0
    %v2491 = vmax.f32 %v2407, 0.0
    %v2492 = vmax.f32 %v2410, 0.0
    %v2493 = vmax.f32 %v2415, 0.0
    %v2494 = vmax.f32 %v2418, 0.0
    %v2495 = vmax.f32 %v2423, 0.0
    %v2496 = vmax.f32 %v2426, 0.0
    %v2497 = vmax.f32 %v2431, 0.0
    %v2498 = vmax.f32 %v2434, 0.0
    %v2499 = vmax.f32 %v2439, 0.0
    %v2500 = vmax.f32 %v2442, 0.0
    %v2501 = vmax.f32 %v2447, 0.0
    %v2502 = vmax.f32 %v2450, 0.0
    %v2503 = vmax.f32 %v2455, 0.0
    %v2504 = vmax.f32 %v2458, 0.0
    %v2505 = vmax.f32 %v2463, 0.0
    %v2506 = vmax.f32 %v2466, 0.0
    %v2507 = vmax.f32 %v2471, 0.0
    %v2508 = vmax.f32 %v2474, 0.0
    %v2509 = vpack.c.bf16 %v2478, %v2477
    %v2510 = vpack.c.bf16 %v2480, %v2479
    %v2511 = vpack.c.bf16 %v2482, %v2481
    %v2512 = vpack.c.bf16 %v2484, %v2483
    %v2513 = vpack.c.bf16 %v2486, %v2485
    %v2514 = vpack.c.bf16 %v2488, %v2487
    %v2515 = vpack.c.bf16 %v2490, %v2489
    %v2516 = vpack.c.bf16 %v2492, %v2491
    %v2517 = vpack.c.bf16 %v2494, %v2493
    %v2518 = vpack.c.bf16 %v2496, %v2495
    %v2519 = vpack.c.bf16 %v2498, %v2497
    %v2520 = vpack.c.bf16 %v2500, %v2499
    %v2521 = vpack.c.bf16 %v2502, %v2501
    %v2522 = vpack.c.bf16 %v2504, %v2503
    %v2523 = vpack.c.bf16 %v2506, %v2505
    %v2524 = vpack.c.bf16 %v2508, %v2507
    %v2525 = vld [vmem:[%s7] sm:$0xff]
    %v2526 = vld [vmem:[%s8] sm:$0xff]
    %2528 = vset.pattern.permute.xlu0 0
    %2529 = vperm.xlu0 %2528, %v2526
    %v2530 = vpop.permute.xlu0 %2529
    %v2533 = vunpack.c.l.b16 %v2525
    %v2534 = vunpack.c.h.b16 %v2525
    %v2535 = vpack.c.b16 %v2533, %v2533
    %v2536 = vpack.c.b16 %v2534, %v2534
    %2539 = vmatprep.subr.bf16.mxu0 0
    %2540 = vmatpush1.bf16.msra.mxu0 %v2509
    %2541 = vmatprep.subr.bf16.mxu0 0
    %2542 = vmatpush1.bf16.msra.mxu0 %v2510
    %2543 = vmatprep.subr.bf16.mxu0 0
    %2544 = vmatpush1.bf16.msra.mxu0 %v2511
    %2545 = vmatprep.subr.bf16.mxu0 0
    %2546 = vmatpush1.bf16.msra.mxu0 %v2512
    %2547 = vmatprep.subr.bf16.mxu0 0
    %2548 = vmatpush1.bf16.msra.mxu0 %v2513
    %2549 = vmatprep.subr.bf16.mxu0 0
    %2550 = vmatpush1.bf16.msra.mxu0 %v2514
    %2551 = vmatprep.subr.bf16.mxu0 0
    %2552 = vmatpush1.bf16.msra.mxu0 %v2515
    %2553 = vmatprep.subr.bf16.mxu0 0
    %2554 = vmatpush1.bf16.msra.mxu0 %v2516
    %2555 = vmatprep.subr.bf16.mxu0 0
    %2556 = vmatpush1.bf16.msra.mxu0 %v2517
    %2557 = vmatprep.subr.bf16.mxu0 0
    %2558 = vmatpush1.bf16.msra.mxu0 %v2518
    %2559 = vmatprep.subr.bf16.mxu0 0
    %2560 = vmatpush1.bf16.msra.mxu0 %v2519
    %2561 = vmatprep.subr.bf16.mxu0 0
    %2562 = vmatpush1.bf16.msra.mxu0 %v2520
    %2563 = vmatprep.subr.bf16.mxu0 0
    %2564 = vmatpush1.bf16.msra.mxu0 %v2521
    %2565 = vmatprep.subr.bf16.mxu0 0
    %2566 = vmatpush1.bf16.msra.mxu0 %v2522
    %2567 = vmatprep.subr.bf16.mxu0 0
    %2568 = vmatpush1.bf16.msra.mxu0 %v2523
    %2569 = vmatprep.subr.bf16.mxu0 0
    %2570 = vmatpush1.bf16.msra.mxu0 %v2524
    %2571 = vmatprep.mubr.bf16.mxu0 %v2536
    %2572 = vmatmul.mubr.bf16.gmra.mrb[0].mxu0 %v2535
    %v2573 = vpop.f32.mrb[0].mxu0
    %v2574 = vadd.f32 %v2530, %v2573
    %v2575 = vpop.f32.mrb[0].mxu0
    %v2576 = vpop.f32.mrb[0].mxu0
    %v2577 = vpop.f32.mrb[0].mxu0
    %2578 = vdwg.mxu0
    %2579 = vst [vmem:[#allocation2] sm:$0xff] %v2574
    // Predicated region
    $region38: #{tpu_custom_call.1} parent=1 // pred_check
      _
    $region39: #{tpu_custom_call.1} parent=1 // pred_check_branch
      %2581 = sbr.rel (0) target = $region41
    $region40: #{tpu_custom_call.1} parent=1 // pred_region
      %s2583 = ssub.s32 128, 128
      %2584 = vsyncadd [#allocation3], %s2583
      %s2586 = sshll.u32 [#allocation2], 4
      %s2587 = int_to_ptr.vmem [resolvable:$true] %s2586
      %2589 = dma.vmem_to_hbm [thread:$0]  %s2587, 128, %s9, [#allocation3]
    $region41: #{tpu_custom_call.1} parent=1 // pred_fallthru
      _
    // Predicated region
    $region42: #{tpu_custom_call.1} parent=1 // pred_check
      _
    $region43: #{tpu_custom_call.1} parent=1 // pred_check_branch
      %2591 = sbr.rel (0) target = $region45
    $region44: #{tpu_custom_call.1} parent=1 // pred_region
      %2592 = dma.done [#allocation3], 128
    $region45: #{tpu_custom_call.1} parent=1 // pred_fallthru
      _
    %2593 = vsyncpa [#allocation3], 1

</llo_original>
